<compile_context>
chip_gen: v7x
topology: tpu7x:2x2x1
jax: 0.10.0
libtpu: 0.0.40
codegen_flags: <defaults>
</compile_context>

<pallas_src>
import jax
import jax.numpy as jnp
from jax.experimental import pallas as pl
from jax.experimental.pallas import tpu as pltpu

C_IN, C1, C2, C3 = 24 + 3, 32, 48, 64
BN_EPS = 1e-5
_LANES = 128
_SUBLANES = 8


def _round_up(v, m):
    return (v + m - 1) // m * m


# ----------------------------------------------------------------------------- kernel
def _pose_kernel(x_ref,
                 w1_ref, c1_ref,
                 w2_ref, c2_ref,
                 w3_ref, c3_ref,
                 wa_ref, ba_ref,
                 vec_ref, attnw_ref):
    tb, n, cin = x_ref.shape
    # Flatten batch*points onto sublanes: one long-M matmul per layer (MXU-friendly).
    x = x_ref[...].reshape(tb * n, cin)                       # (TB*N, 27)

    def layer(h, w_ref, c_ref):
        # Conv1d(k=1) + bias + eval-mode BN folded into (W', shift'); ReLU on VPU.
        y = jnp.dot(h, w_ref[...], preferred_element_type=jnp.float32)
        return jnp.maximum(y + c_ref[...], 0.0)

    h = layer(x, w1_ref, c1_ref)                              # (TB*N, 32)
    h = layer(h, w2_ref, c2_ref)                              # (TB*N, 48)
    h = layer(h, w3_ref, c3_ref)                              # (TB*N, 64)
    h3 = h.reshape(tb, n, C3)                                 # (TB, N, 64); free (N % 8 == 0)

    # Attention logits as a flash-style batched matvec on the MXU.
    # Result is lane-dense (TB, 1, N): point axis on lanes.
    wa_b = jnp.broadcast_to(wa_ref[...], (tb, 1, C3))         # (TB, 1, 64)
    logits = jnp.einsum('bqc,bnc->bqn', wa_b, h3,
                        preferred_element_type=jnp.float32) + ba_ref[...]   # (TB, 1, N)

    # Per-batch softmax over the point dimension: lane reductions + few EUP pushes.
    m = jnp.max(logits, axis=-1, keepdims=True)               # (TB, 1, 1)
    p = jnp.exp(logits - m)                                   # (TB, 1, N)
    denom = jnp.sum(p, axis=-1, keepdims=True)                # (TB, 1, 1)
    attn = p * pl.reciprocal(denom)                           # (TB, 1, N); exact recip

    # Attention-pooled feature vector: batched (1,N)@(N,64) on the MXU.
    vec = jnp.einsum('bqn,bnc->bqc', attn, h3,
                     preferred_element_type=jnp.float32)      # (TB, 1, 64)

    vec_ref[...] = vec.reshape(tb, C3)                        # dense (TB, 64) store
    attnw_ref[...] = attn.reshape(tb, n)                      # dense (TB, N) store


# ----------------------------------------------------------------------------- sizing
def _per_batch_vmem_bytes(N):
    """Lane-padded f32 VMEM cost of one batch element inside the kernel."""
    n_pad = _round_up(N, _SUBLANES)
    in_b = n_pad * _round_up(C_IN, _LANES) * 4                      # x slab: 27 -> 128 lanes
    act_b = n_pad * sum(_round_up(c, _LANES) for c in (C1, C2, C3)) * 4   # h1/h2/h3 temps
    out_b = (_round_up(C3, _LANES) + _round_up(N, _LANES)) * 4      # vec + attn rows
    return 2 * in_b + act_b + 2 * out_b                             # dbl-buffered I/O + temps


def _chip_vmem_bytes():
    try:
        info = pltpu.get_tpu_info()
        cap = getattr(info, "vmem_capacity_bytes", None)
        if cap:
            return int(cap)
    except Exception:
        pass
    return 64 << 20   # conservative fallback (v7x per-TensorCore physical VMEM)


def _pick_tb(B, N, vmem_budget_bytes):
    """Largest batch tile that divides B, fits the *padded* VMEM budget (cap 16),
    and keeps the (tb, C3)/(tb, N) output blocks sublane-tile friendly."""
    per_b = _per_batch_vmem_bytes(N)
    cap = int(max(1, min(vmem_budget_bytes // per_b, 16)))
    divisors = [d for d in range(1, B + 1) if B % d == 0]
    good = [d for d in divisors if d <= cap and (d == B or d % _SUBLANES == 0)]
    if good:
        return max(good)
    ok = [d for d in divisors if d <= cap]
    return max(ok) if ok else 1


# ----------------------------------------------------------------------------- params
def fold_params(raw):
    """Fold conv bias + eval-mode BN affine into the conv weights."""
    (w1, b1, s1, t1, w2, b2, s2, t2, w3, b3, s3, t3, wa, ba) = raw

    def fold(w, b, s, t):
        return w * s, b * s + t                 # (Cin, Cout), (1, Cout)

    w1f, c1 = fold(w1, b1, s1, t1)
    w2f, c2 = fold(w2, b2, s2, t2)
    w3f, c3 = fold(w3, b3, s3, t3)
    # attn Linear(64 -> 1) in the layouts the kernel wants.
    wa3 = wa.reshape(1, 1, C3)
    ba3 = ba.reshape(1, 1, 1)
    return (w1f, c1, w2f, c2, w3f, c3, wa3, ba3)


# ----------------------------------------------------------------------------- wrapper
def global_point_pose_net(x, folded_params, *, tb=None, core_parallel=False):
    """x: (B, N, 27) float32.  Returns (attn_vec (B, 64), attn_weights (B, N, 1))."""
    B, N, _ = x.shape
    (w1, c1, w2, c2, w3, c3, wa, ba) = folded_params

    chip_vmem = _chip_vmem_bytes()
    if tb is None:
        tb = _pick_tb(B, N, vmem_budget_bytes=chip_vmem // 4)
    assert B % tb == 0
    grid = (B // tb,)

    def const_spec(arr):
        nd = arr.ndim
        return pl.BlockSpec(arr.shape, lambda i, _nd=nd: (0,) * _nd)

    in_specs = [pl.BlockSpec((tb, N, C_IN), lambda i: (i, 0, 0))]
    in_specs += [const_spec(p) for p in folded_params]

    out_specs = (
        pl.BlockSpec((tb, C3), lambda i: (i, 0)),     # dense (tb, 64) block
        pl.BlockSpec((tb, N), lambda i: (i, 0)),      # dense (tb, N) block
    )
    out_shape = (
        jax.ShapeDtypeStruct((B, C3), jnp.float32),
        jax.ShapeDtypeStruct((B, N), jnp.float32),
    )

    param_bytes = sum(int(p.size) for p in folded_params) * 4
    steps = B // tb
    cost = pl.CostEstimate(
        flops=2 * B * N * (C_IN * C1 + C1 * C2 + C2 * C3 + 2 * C3),
        transcendentals=B * N,
        bytes_accessed=(B * N * C_IN + B * C3 + B * N) * 4 + steps * param_bytes,
    )

    # Explicit VMEM limit: actual padded footprint + slack, capped by the chip.
    footprint = tb * _per_batch_vmem_bytes(N) + param_bytes + (2 << 20)
    vmem_limit = int(min(max(footprint, 16 << 20), chip_vmem // 2))

    semantics = (pltpu.CORE_PARALLEL,) if core_parallel else ("parallel",)

    vec, attnw = pl.pallas_call(
        _pose_kernel,
        grid=grid,
        in_specs=in_specs,
        out_specs=out_specs,
        out_shape=out_shape,
        compiler_params=pltpu.CompilerParams(
            dimension_semantics=semantics,
            vmem_limit_bytes=vmem_limit),
        cost_estimate=cost,
    )(x, *folded_params)

    # Only a size-1 trailing dim is added: free reshape in the wrapper.
    return vec, attnw.reshape(B, N, 1)


# ----------------------------------------------------------------------------- demo
def _make_raw_params(key):
    """Deterministic synthetic parameters matching the torch module's shapes."""
    ks = iter(jax.random.split(key, 24))

    def linear(cin, cout):
        w = jax.random.normal(next(ks), (cin, cout), jnp.float32) * 0.1
        b = jax.random.normal(next(ks), (1, cout), jnp.float32) * 0.1
        return w, b

    def bn(c):
        gamma = 1.0 + 0.1 * jax.random.normal(next(ks), (1, c), jnp.float32)
        beta = 0.1 * jax.random.normal(next(ks), (1, c), jnp.float32)
        mean = 0.1 * jax.random.normal(next(ks), (1, c), jnp.float32)
        var = jnp.abs(jax.random.normal(next(ks), (1, c), jnp.float32)) + 0.5
        scale = gamma / jnp.sqrt(var + BN_EPS)
        shift = beta - mean * scale
        return scale, shift

    w1, b1 = linear(C_IN, C1)
    s1, t1 = bn(C1)
    w2, b2 = linear(C1, C2)
    s2, t2 = bn(C2)
    w3, b3 = linear(C2, C3)
    s3, t3 = bn(C3)
    wa = jax.random.normal(next(ks), (1, C3), jnp.float32) * 0.1   # Linear(64, 1) weight
    ba = jax.random.normal(next(ks), (1, 1), jnp.float32) * 0.1    # Linear(64, 1) bias
    return (w1, b1, s1, t1, w2, b2, s2, t2, w3, b3, s3, t3, wa, ba)


def _reference(x, raw):
    (w1, b1, s1, t1, w2, b2, s2, t2, w3, b3, s3, t3, wa, ba) = raw

    def layer(h, w, b, s, t):
        return jax.nn.relu((h @ w + b) * s + t)

    h = layer(x, w1, b1, s1, t1)
    h = layer(h, w2, b2, s2, t2)
    h = layer(h, w3, b3, s3, t3)
    logits = jnp.sum(h * wa, axis=-1, keepdims=True) + ba          # (B, N, 1)
    attn = jax.nn.softmax(logits, axis=1)
    vec = jnp.sum(h * attn, axis=1)                                # (B, 64)
    return vec, attn


if __name__ == "__main__":
    key = jax.random.PRNGKey(0)
    kx, kp = jax.random.split(key)
    B, N = 2, 128
    x = jax.random.normal(kx, (B, N, C_IN), jnp.float32)
    raw_params = _make_raw_params(kp)
    folded_params = fold_params(raw_params)

    vec, attnw = global_point_pose_net(x, folded_params)
    vec = jax.block_until_ready(vec)
    attnw = jax.block_until_ready(attnw)

    ref_vec, ref_attnw = _reference(x, raw_params)
    assert vec.shape == (B, C3) and attnw.shape == (B, N, 1)
    assert jnp.allclose(vec, ref_vec, atol=1e-4, rtol=1e-4)
    assert jnp.allclose(attnw, ref_attnw, atol=1e-5, rtol=1e-4)

    print("KERNEL_OK")
</pallas_src>

<mosaic_0001>
module attributes {stable_mosaic.version = 11 : i64} {
  func.func @_pose_kernel(%arg0: i32, %arg1: memref<2x128x27xf32, #tpu.memory_space<vmem>>, %arg2: memref<27x32xf32, #tpu.memory_space<vmem>>, %arg3: memref<1x32xf32, #tpu.memory_space<vmem>>, %arg4: memref<32x48xf32, #tpu.memory_space<vmem>>, %arg5: memref<1x48xf32, #tpu.memory_space<vmem>>, %arg6: memref<48x64xf32, #tpu.memory_space<vmem>>, %arg7: memref<1x64xf32, #tpu.memory_space<vmem>>, %arg8: memref<1x1x64xf32, #tpu.memory_space<vmem>>, %arg9: memref<1x1x1xf32, #tpu.memory_space<vmem>>, %arg10: memref<2x64xf32, #tpu.memory_space<vmem>>, %arg11: memref<2x128xf32, #tpu.memory_space<vmem>>) attributes {dimension_semantics = [#tpu.dimension_semantics<parallel>], iteration_bounds = array<i64: 1>, scalar_prefetch = 0 : i64, scratch_operands = 0 : i64, tpu.core_type = #tpu.core_type<tc>, window_params = [{transform_indices = @transform_0, window_bounds = array<i64: 2, 128, 27>}, {pipeline_mode = #tpu.pipeline_mode<synchronous>, transform_indices = @transform_1, window_bounds = array<i64: 27, 32>}, {pipeline_mode = #tpu.pipeline_mode<synchronous>, transform_indices = @transform_2, window_bounds = array<i64: 1, 32>}, {pipeline_mode = #tpu.pipeline_mode<synchronous>, transform_indices = @transform_3, window_bounds = array<i64: 32, 48>}, {pipeline_mode = #tpu.pipeline_mode<synchronous>, transform_indices = @transform_4, window_bounds = array<i64: 1, 48>}, {pipeline_mode = #tpu.pipeline_mode<synchronous>, transform_indices = @transform_5, window_bounds = array<i64: 48, 64>}, {pipeline_mode = #tpu.pipeline_mode<synchronous>, transform_indices = @transform_6, window_bounds = array<i64: 1, 64>}, {pipeline_mode = #tpu.pipeline_mode<synchronous>, transform_indices = @transform_7, window_bounds = array<i64: 1, 1, 64>}, {pipeline_mode = #tpu.pipeline_mode<synchronous>, transform_indices = @transform_8, window_bounds = array<i64: 1, 1, 1>}, {transform_indices = @transform_9, window_bounds = array<i64: 2, 64>}, {transform_indices = @transform_10, window_bounds = array<i64: 2, 128>}]} {
    %c0 = arith.constant 0 : index
    %c0_0 = arith.constant 0 : index
    %c0_1 = arith.constant 0 : index
    %0 = vector.load %arg1[%c0, %c0_0, %c0_1] : memref<2x128x27xf32, #tpu.memory_space<vmem>>, vector<2x128x27xf32>
    %1 = vector.shape_cast %0 : vector<2x128x27xf32> to vector<256x27xf32>
    %c0_2 = arith.constant 0 : index
    %c0_3 = arith.constant 0 : index
    %2 = vector.load %arg2[%c0_2, %c0_3] : memref<27x32xf32, #tpu.memory_space<vmem>>, vector<27x32xf32>
    %cst = arith.constant dense<0.000000e+00> : vector<256x32xf32>
    %3 = tpu.matmul %1, %2, %cst {dimension_numbers = #tpu.dot_dimension_numbers<[1], [0], [0], [1], [0, 0, 1, 1], [], []>} : vector<256x27xf32>, vector<27x32xf32>, vector<256x32xf32> -> vector<256x32xf32>
    %c0_4 = arith.constant 0 : index
    %c0_5 = arith.constant 0 : index
    %4 = vector.load %arg3[%c0_4, %c0_5] : memref<1x32xf32, #tpu.memory_space<vmem>>, vector<1x32xf32>
    %5 = vector.broadcast %4 : vector<1x32xf32> to vector<256x32xf32>
    %6 = arith.addf %3, %5 : vector<256x32xf32>
    %cst_6 = arith.constant 0.000000e+00 : f32
    %7 = vector.broadcast %cst_6 : f32 to vector<256x32xf32>
    %8 = arith.maximumf %6, %7 : vector<256x32xf32>
    %c0_7 = arith.constant 0 : index
    %c0_8 = arith.constant 0 : index
    %9 = vector.load %arg4[%c0_7, %c0_8] : memref<32x48xf32, #tpu.memory_space<vmem>>, vector<32x48xf32>
    %cst_9 = arith.constant dense<0.000000e+00> : vector<256x48xf32>
    %10 = tpu.matmul %8, %9, %cst_9 {dimension_numbers = #tpu.dot_dimension_numbers<[1], [0], [0], [1], [0, 0, 1, 1], [], []>} : vector<256x32xf32>, vector<32x48xf32>, vector<256x48xf32> -> vector<256x48xf32>
    %c0_10 = arith.constant 0 : index
    %c0_11 = arith.constant 0 : index
    %11 = vector.load %arg5[%c0_10, %c0_11] : memref<1x48xf32, #tpu.memory_space<vmem>>, vector<1x48xf32>
    %12 = vector.broadcast %11 : vector<1x48xf32> to vector<256x48xf32>
    %13 = arith.addf %10, %12 : vector<256x48xf32>
    %cst_12 = arith.constant 0.000000e+00 : f32
    %14 = vector.broadcast %cst_12 : f32 to vector<256x48xf32>
    %15 = arith.maximumf %13, %14 : vector<256x48xf32>
    %c0_13 = arith.constant 0 : index
    %c0_14 = arith.constant 0 : index
    %16 = vector.load %arg6[%c0_13, %c0_14] : memref<48x64xf32, #tpu.memory_space<vmem>>, vector<48x64xf32>
    %cst_15 = arith.constant dense<0.000000e+00> : vector<256x64xf32>
    %17 = tpu.matmul %15, %16, %cst_15 {dimension_numbers = #tpu.dot_dimension_numbers<[1], [0], [0], [1], [0, 0, 1, 1], [], []>} : vector<256x48xf32>, vector<48x64xf32>, vector<256x64xf32> -> vector<256x64xf32>
    %c0_16 = arith.constant 0 : index
    %c0_17 = arith.constant 0 : index
    %18 = vector.load %arg7[%c0_16, %c0_17] : memref<1x64xf32, #tpu.memory_space<vmem>>, vector<1x64xf32>
    %19 = vector.broadcast %18 : vector<1x64xf32> to vector<256x64xf32>
    %20 = arith.addf %17, %19 : vector<256x64xf32>
    %cst_18 = arith.constant 0.000000e+00 : f32
    %21 = vector.broadcast %cst_18 : f32 to vector<256x64xf32>
    %22 = arith.maximumf %20, %21 : vector<256x64xf32>
    %23 = vector.shape_cast %22 : vector<256x64xf32> to vector<2x128x64xf32>
    %c0_19 = arith.constant 0 : index
    %c0_20 = arith.constant 0 : index
    %c0_21 = arith.constant 0 : index
    %24 = vector.load %arg8[%c0_19, %c0_20, %c0_21] : memref<1x1x64xf32, #tpu.memory_space<vmem>>, vector<1x1x64xf32>
    %25 = vector.shape_cast %24 : vector<1x1x64xf32> to vector<1x1x64xf32>
    %26 = vector.broadcast %25 : vector<1x1x64xf32> to vector<2x1x64xf32>
    "tpu.trace_start"() <{level = 10 : i32, message = "bqc,bnc->bqn"}> : () -> ()
    %cst_22 = arith.constant dense<0.000000e+00> : vector<2x1x128xf32>
    %27 = tpu.matmul %26, %23, %cst_22 {dimension_numbers = #tpu.dot_dimension_numbers<[2], [2], [1], [1], [0, 0, 0, 1, 1, 1], [0], [0]>} : vector<2x1x64xf32>, vector<2x128x64xf32>, vector<2x1x128xf32> -> vector<2x1x128xf32>
    "tpu.trace_stop"() : () -> ()
    %c0_23 = arith.constant 0 : index
    %c0_24 = arith.constant 0 : index
    %c0_25 = arith.constant 0 : index
    %28 = vector.load %arg9[%c0_23, %c0_24, %c0_25] : memref<1x1x1xf32, #tpu.memory_space<vmem>>, vector<1x1x1xf32>
    %29 = vector.broadcast %28 : vector<1x1x1xf32> to vector<2x1x128xf32>
    %30 = arith.addf %27, %29 : vector<2x1x128xf32>
    %cst_26 = arith.constant dense<0xFF800000> : vector<2x1xf32>
    %31 = vector.multi_reduction <maximumf>, %30, %cst_26 [2] : vector<2x1x128xf32> to vector<2x1xf32>
    %32 = vector.shape_cast %31 : vector<2x1xf32> to vector<2x1x1xf32>
    %33 = vector.broadcast %32 : vector<2x1x1xf32> to vector<2x1x128xf32>
    %34 = arith.subf %30, %33 : vector<2x1x128xf32>
    %35 = math.exp %34 : vector<2x1x128xf32>
    %cst_27 = arith.constant dense<0.000000e+00> : vector<2x1xf32>
    %36 = vector.multi_reduction <add>, %35, %cst_27 [2] : vector<2x1x128xf32> to vector<2x1xf32>
    %37 = vector.shape_cast %36 : vector<2x1xf32> to vector<2x1x1xf32>
    %38 = tpu.reciprocal %37 : vector<2x1x1xf32> -> vector<2x1x1xf32>
    %39 = vector.broadcast %38 : vector<2x1x1xf32> to vector<2x1x128xf32>
    %40 = arith.mulf %35, %39 : vector<2x1x128xf32>
    "tpu.trace_start"() <{level = 10 : i32, message = "bqn,bnc->bqc"}> : () -> ()
    %cst_28 = arith.constant dense<0.000000e+00> : vector<2x1x64xf32>
    %41 = tpu.matmul %40, %23, %cst_28 {dimension_numbers = #tpu.dot_dimension_numbers<[2], [1], [1], [2], [0, 0, 0, 1, 1, 2], [0], [0]>} : vector<2x1x128xf32>, vector<2x128x64xf32>, vector<2x1x64xf32> -> vector<2x1x64xf32>
    "tpu.trace_stop"() : () -> ()
    %42 = vector.shape_cast %41 : vector<2x1x64xf32> to vector<2x64xf32>
    %c0_29 = arith.constant 0 : index
    %c0_30 = arith.constant 0 : index
    %43 = vector.load %arg10[%c0_29, %c0_30] : memref<2x64xf32, #tpu.memory_space<vmem>>, vector<2x64xf32>
    tpu.vector_store %arg10[%c0_29, %c0_30], %42 {strides = array<i32>} : memref<2x64xf32, #tpu.memory_space<vmem>>, vector<2x64xf32>,
    %44 = vector.shape_cast %40 : vector<2x1x128xf32> to vector<2x128xf32>
    %c0_31 = arith.constant 0 : index
    %c0_32 = arith.constant 0 : index
    %45 = vector.load %arg11[%c0_31, %c0_32] : memref<2x128xf32, #tpu.memory_space<vmem>>, vector<2x128xf32>
    tpu.vector_store %arg11[%c0_31, %c0_32], %44 {strides = array<i32>} : memref<2x128xf32, #tpu.memory_space<vmem>>, vector<2x128xf32>,
    return
  }
  func.func @transform_0(%arg0: i32) -> (i32, i32, i32) {
    %c0_i32 = arith.constant 0 : i32
    %c0_i32_0 = arith.constant 0 : i32
    %c0_i32_1 = arith.constant 0 : i32
    return %arg0, %c0_i32, %c0_i32_0 : i32, i32, i32
  }
  func.func @transform_1(%arg0: i32) -> (i32, i32) {
    %c0_i32 = arith.constant 0 : i32
    %c0_i32_0 = arith.constant 0 : i32
    %c0_i32_1 = arith.constant 0 : i32
    return %c0_i32, %c0_i32_0 : i32, i32
  }
  func.func @transform_2(%arg0: i32) -> (i32, i32) {
    %c0_i32 = arith.constant 0 : i32
    %c0_i32_0 = arith.constant 0 : i32
    %c0_i32_1 = arith.constant 0 : i32
    return %c0_i32, %c0_i32_0 : i32, i32
  }
  func.func @transform_3(%arg0: i32) -> (i32, i32) {
    %c0_i32 = arith.constant 0 : i32
    %c0_i32_0 = arith.constant 0 : i32
    %c0_i32_1 = arith.constant 0 : i32
    return %c0_i32, %c0_i32_0 : i32, i32
  }
  func.func @transform_4(%arg0: i32) -> (i32, i32) {
    %c0_i32 = arith.constant 0 : i32
    %c0_i32_0 = arith.constant 0 : i32
    %c0_i32_1 = arith.constant 0 : i32
    return %c0_i32, %c0_i32_0 : i32, i32
  }
  func.func @transform_5(%arg0: i32) -> (i32, i32) {
    %c0_i32 = arith.constant 0 : i32
    %c0_i32_0 = arith.constant 0 : i32
    %c0_i32_1 = arith.constant 0 : i32
    return %c0_i32, %c0_i32_0 : i32, i32
  }
  func.func @transform_6(%arg0: i32) -> (i32, i32) {
    %c0_i32 = arith.constant 0 : i32
    %c0_i32_0 = arith.constant 0 : i32
    %c0_i32_1 = arith.constant 0 : i32
    return %c0_i32, %c0_i32_0 : i32, i32
  }
  func.func @transform_7(%arg0: i32) -> (i32, i32, i32) {
    %c0_i32 = arith.constant 0 : i32
    %c0_i32_0 = arith.constant 0 : i32
    %c0_i32_1 = arith.constant 0 : i32
    %c0_i32_2 = arith.constant 0 : i32
    return %c0_i32, %c0_i32_0, %c0_i32_1 : i32, i32, i32
  }
  func.func @transform_8(%arg0: i32) -> (i32, i32, i32) {
    %c0_i32 = arith.constant 0 : i32
    %c0_i32_0 = arith.constant 0 : i32
    %c0_i32_1 = arith.constant 0 : i32
    %c0_i32_2 = arith.constant 0 : i32
    return %c0_i32, %c0_i32_0, %c0_i32_1 : i32, i32, i32
  }
  func.func @transform_9(%arg0: i32) -> (i32, i32) {
    %c0_i32 = arith.constant 0 : i32
    %c0_i32_0 = arith.constant 0 : i32
    return %arg0, %c0_i32 : i32, i32
  }
  func.func @transform_10(%arg0: i32) -> (i32, i32) {
    %c0_i32 = arith.constant 0 : i32
    %c0_i32_0 = arith.constant 0 : i32
    return %arg0, %c0_i32 : i32, i32
  }
}

</mosaic_0001>

<llo_original>
// kernel: tpu_custom_call.1
$region0: #{tpu_custom_call.1}
  #allocation0 [shape = 'u32[]', space=smem, size = 0x4, offset = 0x4, fixed_abs, tag = 'smem constant byte address 0x4 - core index']
  #allocation1 [shape = 'u32[144,128]{1,0:T(1,128)}', space=vmem, size = 0x12000, scoped, tag = 'internal scratch']
  #allocation2 [shape = 'f32[1,1,1]{2,1,0:T(1,128)S(1)}', space=vmem, size = 0x200, scoped, tag = 'scoped memory for tpu_custom_call.1']
  %s0 = inlined_call_operand.vmem [shape: f32[2,128,27], index: 0, kind: input, shape index: {}]
  %s1 = inlined_call_operand.vmem [shape: f32[27,32], index: 1, kind: input, shape index: {}]
  %s2 = inlined_call_operand.vmem [shape: f32[1,32], index: 2, kind: input, shape index: {}]
  %s3 = inlined_call_operand.vmem [shape: f32[32,48], index: 3, kind: input, shape index: {}]
  %s4 = inlined_call_operand.vmem [shape: f32[1,48], index: 4, kind: input, shape index: {}]
  %s5 = inlined_call_operand.vmem [shape: f32[48,64], index: 5, kind: input, shape index: {}]
  %s6 = inlined_call_operand.vmem [shape: f32[1,64], index: 6, kind: input, shape index: {}]
  %s7 = inlined_call_operand.vmem [shape: f32[1,1,64], index: 7, kind: input, shape index: {}]
  %s8 = inlined_call_operand.<no memory space> [shape: f32[1,1,1], index: 8, kind: input, shape index: {}]
  %s9 = inlined_call_operand.hbm [shape: f32[2,64], index: 9, kind: output, shape index: {0}]
  %s10 = inlined_call_operand.hbm [shape: f32[2,128], index: 10, kind: output, shape index: {1}]
  %11 = xla_tuple %s9, %s10
  %s12 = sld [smem:[#allocation0]]
  $region54: #{tpu_custom_call.1} parent=0
    _
  %s14 = ssub.s32 1, %s12
  %s15 = scalar_select 0, %s14, %s12
  %v16 = vstv %s8
  %17 = vst [vmem:[#allocation2] sm:$0x1] %v16
  $region1: #{tpu_custom_call.1} parent=0
    #allocation3 [shape = 'u8[1024]{0}', space=vmem, size = 0x400, scoped, tag = 'output window, operand 0, single buffered']
    #allocation4 [shape = 's32[1]{0}', space=sflag, size = 0x4, scoped, tag = 'scoped memory for tpu_custom_call.1']
    #allocation5 [shape = 'u8[1024]{0}', space=vmem, size = 0x400, scoped, tag = 'output window, operand 1, single buffered']
    #allocation6 [shape = 's32[1]{0}', space=sflag, size = 0x4, scoped, tag = 'scoped memory for tpu_custom_call.1']
    %18 = vsyncpa [#allocation4], 0
    %19 = vsyncpa [#allocation6], 0
    // Predicated region
    $region2: #{tpu_custom_call.1} parent=1 // pred_check
      _
    $region3: #{tpu_custom_call.1} parent=1 // pred_check_branch
      %21 = sbr.rel (0) target = $region5
    $region4: #{tpu_custom_call.1} parent=1 // pred_region
      _
    $region5: #{tpu_custom_call.1} parent=1 // pred_fallthru
      _
    // Predicated region
    $region6: #{tpu_custom_call.1} parent=1 // pred_check
      _
    $region7: #{tpu_custom_call.1} parent=1 // pred_check_branch
      %23 = sbr.rel (0) target = $region9
    $region8: #{tpu_custom_call.1} parent=1 // pred_region
      _
    $region9: #{tpu_custom_call.1} parent=1 // pred_fallthru
      _
    // Predicated region
    $region10: #{tpu_custom_call.1} parent=1 // pred_check
      _
    $region11: #{tpu_custom_call.1} parent=1 // pred_check_branch
      %25 = sbr.rel (0) target = $region13
    $region12: #{tpu_custom_call.1} parent=1 // pred_region
      _
    $region13: #{tpu_custom_call.1} parent=1 // pred_fallthru
      _
    // Predicated region
    $region14: #{tpu_custom_call.1} parent=1 // pred_check
      _
    $region15: #{tpu_custom_call.1} parent=1 // pred_check_branch
      %27 = sbr.rel (0) target = $region17
    $region16: #{tpu_custom_call.1} parent=1 // pred_region
      _
    $region17: #{tpu_custom_call.1} parent=1 // pred_fallthru
      _
    // Predicated region
    $region18: #{tpu_custom_call.1} parent=1 // pred_check
      _
    $region19: #{tpu_custom_call.1} parent=1 // pred_check_branch
      %29 = sbr.rel (0) target = $region21
    $region20: #{tpu_custom_call.1} parent=1 // pred_region
      _
    $region21: #{tpu_custom_call.1} parent=1 // pred_fallthru
      _
    // Predicated region
    $region22: #{tpu_custom_call.1} parent=1 // pred_check
      _
    $region23: #{tpu_custom_call.1} parent=1 // pred_check_branch
      %31 = sbr.rel (0) target = $region25
    $region24: #{tpu_custom_call.1} parent=1 // pred_region
      _
    $region25: #{tpu_custom_call.1} parent=1 // pred_fallthru
      _
    // Predicated region
    $region26: #{tpu_custom_call.1} parent=1 // pred_check
      _
    $region27: #{tpu_custom_call.1} parent=1 // pred_check_branch
      %33 = sbr.rel (0) target = $region29
    $region28: #{tpu_custom_call.1} parent=1 // pred_region
      _
    $region29: #{tpu_custom_call.1} parent=1 // pred_fallthru
      _
    // Predicated region
    $region30: #{tpu_custom_call.1} parent=1 // pred_check
      _
    $region31: #{tpu_custom_call.1} parent=1 // pred_check_branch
      %35 = sbr.rel (0) target = $region33
    $region32: #{tpu_custom_call.1} parent=1 // pred_region
      _
    $region33: #{tpu_custom_call.1} parent=1 // pred_fallthru
      _
    // Predicated region
    $region34: #{tpu_custom_call.1} parent=1 // pred_check
      _
    $region35: #{tpu_custom_call.1} parent=1 // pred_check_branch
      %37 = sbr.rel (0) target = $region37
    $region36: #{tpu_custom_call.1} parent=1 // pred_region
      _
    $region37: #{tpu_custom_call.1} parent=1 // pred_fallthru
      _
    %v38 = vld [vmem:[%s0] sm:$0xff]
    %v39 = vld [vmem:[%s0 + $0x8] sm:$0xff]
    %v40 = vld [vmem:[%s0 + $0x10] sm:$0xff]
    %v41 = vld [vmem:[%s0 + $0x18] sm:$0xff]
    %v42 = vld [vmem:[%s0 + $0x20] sm:$0xff]
    %v43 = vld [vmem:[%s0 + $0x28] sm:$0xff]
    %v44 = vld [vmem:[%s0 + $0x30] sm:$0xff]
    %v45 = vld [vmem:[%s0 + $0x38] sm:$0xff]
    %v46 = vld [vmem:[%s0 + $0x40] sm:$0xff]
    %v47 = vld [vmem:[%s0 + $0x48] sm:$0xff]
    %v48 = vld [vmem:[%s0 + $0x50] sm:$0xff]
    %v49 = vld [vmem:[%s0 + $0x58] sm:$0xff]
    %v50 = vld [vmem:[%s0 + $0x60] sm:$0xff]
    %v51 = vld [vmem:[%s0 + $0x68] sm:$0xff]
    %v52 = vld [vmem:[%s0 + $0x70] sm:$0xff]
    %v53 = vld [vmem:[%s0 + $0x78] sm:$0xff]
    %v54 = vld [vmem:[%s0 + $0x80] sm:$0xff]
    %v55 = vld [vmem:[%s0 + $0x88] sm:$0xff]
    %v56 = vld [vmem:[%s0 + $0x90] sm:$0xff]
    %v57 = vld [vmem:[%s0 + $0x98] sm:$0xff]
    %v58 = vld [vmem:[%s0 + $0xa0] sm:$0xff]
    %v59 = vld [vmem:[%s0 + $0xa8] sm:$0xff]
    %v60 = vld [vmem:[%s0 + $0xb0] sm:$0xff]
    %v61 = vld [vmem:[%s0 + $0xb8] sm:$0xff]
    %v62 = vld [vmem:[%s0 + $0xc0] sm:$0xff]
    %v63 = vld [vmem:[%s0 + $0xc8] sm:$0xff]
    %v64 = vld [vmem:[%s0 + $0xd0] sm:$0xff]
    %v65 = vld [vmem:[%s0 + $0xd8] sm:$0xff]
    %v66 = vld [vmem:[%s0 + $0xe0] sm:$0xff]
    %v67 = vld [vmem:[%s0 + $0xe8] sm:$0xff]
    %v68 = vld [vmem:[%s0 + $0xf0] sm:$0xff]
    %v69 = vld [vmem:[%s0 + $0xf8] sm:$0xff]
    %v70 = vld [vmem:[%s1] sm:$0xff]
    %v71 = vld [vmem:[%s1 + $0x8] sm:$0xff]
    %v72 = vld [vmem:[%s1 + $0x10] sm:$0xff]
    %v73 = vld [vmem:[%s1 + $0x18] sm:$0x7]
    %v74 = vld [vmem:[%s2] sm:$0x1]
    %v76 = vlaneseq
    %v77 = vshrl.u32 %v76, 7
    %v78 = vsub.s32 0, %v77
    %v79 = vrot.slane %v74, %v78
    %vm81 = vcmask 220160
    %v83 = vsel %vm81, %v38, 0
    %v86 = vsel %vm81, %v39, 0
    %v89 = vsel %vm81, %v40, 0
    %v92 = vsel %vm81, %v41, 0
    %v95 = vsel %vm81, %v42, 0
    %v98 = vsel %vm81, %v43, 0
    %v101 = vsel %vm81, %v44, 0
    %v104 = vsel %vm81, %v45, 0
    %v107 = vsel %vm81, %v46, 0
    %v110 = vsel %vm81, %v47, 0
    %v113 = vsel %vm81, %v48, 0
    %v116 = vsel %vm81, %v49, 0
    %v119 = vsel %vm81, %v50, 0
    %v122 = vsel %vm81, %v51, 0
    %v125 = vsel %vm81, %v52, 0
    %v128 = vsel %vm81, %v53, 0
    %v131 = vsel %vm81, %v54, 0
    %v134 = vsel %vm81, %v55, 0
    %v137 = vsel %vm81, %v56, 0
    %v140 = vsel %vm81, %v57, 0
    %v143 = vsel %vm81, %v58, 0
    %v146 = vsel %vm81, %v59, 0
    %v149 = vsel %vm81, %v60, 0
    %v152 = vsel %vm81, %v61, 0
    %v155 = vsel %vm81, %v62, 0
    %v158 = vsel %vm81, %v63, 0
    %v161 = vsel %vm81, %v64, 0
    %v164 = vsel %vm81, %v65, 0
    %v167 = vsel %vm81, %v66, 0
    %v170 = vsel %vm81, %v67, 0
    %v173 = vsel %vm81, %v68, 0
    %v176 = vsel %vm81, %v69, 0
    %vm178 = vcmask 1042432
    %v180 = vsel %vm178, %v73, 0
    %182 = vmatprep.subr.mxu0 0.0
    %183 = vmatpush1.msra.mxu0 %v70
    %184 = vmatprep.subr.mxu0 0.0
    %185 = vmatpush1.msra.mxu0 %v71
    %186 = vmatprep.subr.mxu0 0.0
    %187 = vmatpush1.msra.mxu0 %v72
    %188 = vmatprep.subr.mxu0 0.0
    %189 = vmatpush1.msra.mxu0 %v180
    %190 = vmatprep.subr.mxu0 0.0
    %191 = vmatpush1.msra.mxu0 0.0
    %192 = vmatprep.subr.mxu0 0.0
    %193 = vmatpush1.msra.mxu0 0.0
    %194 = vmatprep.subr.mxu0 0.0
    %195 = vmatpush1.msra.mxu0 0.0
    %196 = vmatprep.subr.mxu0 0.0
    %197 = vmatpush1.msra.mxu0 0.0
    %198 = vmatprep.subr.mxu0 0.0
    %199 = vmatpush1.msra.mxu0 0.0
    %200 = vmatprep.subr.mxu0 0.0
    %201 = vmatpush1.msra.mxu0 0.0
    %202 = vmatprep.subr.mxu0 0.0
    %203 = vmatpush1.msra.mxu0 0.0
    %204 = vmatprep.subr.mxu0 0.0
    %205 = vmatpush1.msra.mxu0 0.0
    %206 = vmatprep.subr.mxu0 0.0
    %207 = vmatpush1.msra.mxu0 0.0
    %208 = vmatprep.subr.mxu0 0.0
    %209 = vmatpush1.msra.mxu0 0.0
    %210 = vmatprep.subr.mxu0 0.0
    %211 = vmatpush1.msra.mxu0 0.0
    %212 = vmatprep.subr.mxu0 0.0
    %213 = vmatpush1.msra.mxu0 0.0
    %214 = vmatprep.subr.mxu0 0.0
    %215 = vmatpush1.msra.mxu0 0.0
    %216 = vmatprep.subr.mxu0 0.0
    %217 = vmatpush1.msra.mxu0 0.0
    %218 = vmatprep.subr.mxu0 0.0
    %219 = vmatpush1.msra.mxu0 0.0
    %220 = vmatprep.subr.mxu0 0.0
    %221 = vmatpush1.msra.mxu0 0.0
    %222 = vmatprep.subr.mxu0 0.0
    %223 = vmatpush1.msra.mxu0 0.0
    %224 = vmatprep.subr.mxu0 0.0
    %225 = vmatpush1.msra.mxu0 0.0
    %226 = vmatprep.subr.mxu0 0.0
    %227 = vmatpush1.msra.mxu0 0.0
    %228 = vmatprep.subr.mxu0 0.0
    %229 = vmatpush1.msra.mxu0 0.0
    %230 = vmatprep.subr.mxu0 0.0
    %231 = vmatpush1.msra.mxu0 0.0
    %232 = vmatprep.subr.mxu0 0.0
    %233 = vmatpush1.msra.mxu0 0.0
    %234 = vmatprep.subr.mxu0 0.0
    %235 = vmatpush1.msra.mxu0 0.0
    %236 = vmatprep.subr.mxu0 0.0
    %237 = vmatpush1.msra.mxu0 0.0
    %238 = vmatprep.subr.mxu0 0.0
    %239 = vmatpush1.msra.mxu0 0.0
    %240 = vmatprep.subr.mxu0 0.0
    %241 = vmatpush1.msra.mxu0 0.0
    %242 = vmatprep.subr.mxu0 0.0
    %243 = vmatpush1.msra.mxu0 0.0
    %244 = vmatprep.subr.mxu0 0.0
    %245 = vmatpush1.msra.mxu0 0.0
    %246 = vmatprep.mubr.f32.mxu0 0.0
    %247 = vmatmul.mubr.f32.gmra.mrb[0].mxu0 %v83
    %v248 = vpop.f32.mrb[0].mxu0
    %v249 = vadd.f32 %v79, %v248
    %v250 = vpop.f32.mrb[0].mxu0
    %251 = vmatprep.mubr.f32.mxu0 0.0
    %252 = vmatmul.mubr.f32.gmra.mrb[0].mxu0 %v86
    %v253 = vpop.f32.mrb[0].mxu0
    %v254 = vadd.f32 %v79, %v253
    %v255 = vpop.f32.mrb[0].mxu0
    %256 = vmatprep.mubr.f32.mxu0 0.0
    %257 = vmatmul.mubr.f32.gmra.mrb[0].mxu0 %v89
    %v258 = vpop.f32.mrb[0].mxu0
    %v259 = vadd.f32 %v79, %v258
    %v260 = vpop.f32.mrb[0].mxu0
    %261 = vmatprep.mubr.f32.mxu0 0.0
    %262 = vmatmul.mubr.f32.gmra.mrb[0].mxu0 %v92
    %v263 = vpop.f32.mrb[0].mxu0
    %v264 = vadd.f32 %v79, %v263
    %v265 = vpop.f32.mrb[0].mxu0
    %266 = vmatprep.mubr.f32.mxu0 0.0
    %267 = vmatmul.mubr.f32.gmra.mrb[0].mxu0 %v95
    %v268 = vpop.f32.mrb[0].mxu0
    %v269 = vadd.f32 %v79, %v268
    %v270 = vpop.f32.mrb[0].mxu0
    %271 = vmatprep.mubr.f32.mxu0 0.0
    %272 = vmatmul.mubr.f32.gmra.mrb[0].mxu0 %v98
    %v273 = vpop.f32.mrb[0].mxu0
    %v274 = vadd.f32 %v79, %v273
    %v275 = vpop.f32.mrb[0].mxu0
    %276 = vmatprep.mubr.f32.mxu0 0.0
    %277 = vmatmul.mubr.f32.gmra.mrb[0].mxu0 %v101
    %v278 = vpop.f32.mrb[0].mxu0
    %v279 = vadd.f32 %v79, %v278
    %v280 = vpop.f32.mrb[0].mxu0
    %281 = vmatprep.mubr.f32.mxu0 0.0
    %282 = vmatmul.mubr.f32.gmra.mrb[0].mxu0 %v104
    %v283 = vpop.f32.mrb[0].mxu0
    %v284 = vadd.f32 %v79, %v283
    %v285 = vpop.f32.mrb[0].mxu0
    %286 = vmatprep.mubr.f32.mxu0 0.0
    %287 = vmatmul.mubr.f32.gmra.mrb[0].mxu0 %v107
    %v288 = vpop.f32.mrb[0].mxu0
    %v289 = vadd.f32 %v79, %v288
    %v290 = vpop.f32.mrb[0].mxu0
    %291 = vmatprep.mubr.f32.mxu0 0.0
    %292 = vmatmul.mubr.f32.gmra.mrb[0].mxu0 %v110
    %v293 = vpop.f32.mrb[0].mxu0
    %v294 = vadd.f32 %v79, %v293
    %v295 = vpop.f32.mrb[0].mxu0
    %296 = vmatprep.mubr.f32.mxu0 0.0
    %297 = vmatmul.mubr.f32.gmra.mrb[0].mxu0 %v113
    %v298 = vpop.f32.mrb[0].mxu0
    %v299 = vadd.f32 %v79, %v298
    %v300 = vpop.f32.mrb[0].mxu0
    %301 = vmatprep.mubr.f32.mxu0 0.0
    %302 = vmatmul.mubr.f32.gmra.mrb[0].mxu0 %v116
    %v303 = vpop.f32.mrb[0].mxu0
    %v304 = vadd.f32 %v79, %v303
    %v305 = vpop.f32.mrb[0].mxu0
    %306 = vmatprep.mubr.f32.mxu0 0.0
    %307 = vmatmul.mubr.f32.gmra.mrb[0].mxu0 %v119
    %v308 = vpop.f32.mrb[0].mxu0
    %v309 = vadd.f32 %v79, %v308
    %v310 = vpop.f32.mrb[0].mxu0
    %311 = vmatprep.mubr.f32.mxu0 0.0
    %312 = vmatmul.mubr.f32.gmra.mrb[0].mxu0 %v122
    %v313 = vpop.f32.mrb[0].mxu0
    %v314 = vadd.f32 %v79, %v313
    %v315 = vpop.f32.mrb[0].mxu0
    %316 = vmatprep.mubr.f32.mxu0 0.0
    %317 = vmatmul.mubr.f32.gmra.mrb[0].mxu0 %v125
    %v318 = vpop.f32.mrb[0].mxu0
    %v319 = vadd.f32 %v79, %v318
    %v320 = vpop.f32.mrb[0].mxu0
    %321 = vmatprep.mubr.f32.mxu0 0.0
    %322 = vmatmul.mubr.f32.gmra.mrb[0].mxu0 %v128
    %v323 = vpop.f32.mrb[0].mxu0
    %v324 = vadd.f32 %v79, %v323
    %v325 = vpop.f32.mrb[0].mxu0
    %326 = vmatprep.mubr.f32.mxu0 0.0
    %327 = vmatmul.mubr.f32.gmra.mrb[0].mxu0 %v131
    %v328 = vpop.f32.mrb[0].mxu0
    %v329 = vadd.f32 %v79, %v328
    %v330 = vpop.f32.mrb[0].mxu0
    %331 = vmatprep.mubr.f32.mxu0 0.0
    %332 = vmatmul.mubr.f32.gmra.mrb[0].mxu0 %v134
    %v333 = vpop.f32.mrb[0].mxu0
    %v334 = vadd.f32 %v79, %v333
    %v335 = vpop.f32.mrb[0].mxu0
    %336 = vmatprep.mubr.f32.mxu0 0.0
    %337 = vmatmul.mubr.f32.gmra.mrb[0].mxu0 %v137
    %v338 = vpop.f32.mrb[0].mxu0
    %v339 = vadd.f32 %v79, %v338
    %v340 = vpop.f32.mrb[0].mxu0
    %341 = vmatprep.mubr.f32.mxu0 0.0
    %342 = vmatmul.mubr.f32.gmra.mrb[0].mxu0 %v140
    %v343 = vpop.f32.mrb[0].mxu0
    %v344 = vadd.f32 %v79, %v343
    %v345 = vpop.f32.mrb[0].mxu0
    %346 = vmatprep.mubr.f32.mxu0 0.0
    %347 = vmatmul.mubr.f32.gmra.mrb[0].mxu0 %v143
    %v348 = vpop.f32.mrb[0].mxu0
    %v349 = vadd.f32 %v79, %v348
    %v350 = vpop.f32.mrb[0].mxu0
    %351 = vmatprep.mubr.f32.mxu0 0.0
    %352 = vmatmul.mubr.f32.gmra.mrb[0].mxu0 %v146
    %v353 = vpop.f32.mrb[0].mxu0
    %v354 = vadd.f32 %v79, %v353
    %v355 = vpop.f32.mrb[0].mxu0
    %356 = vmatprep.mubr.f32.mxu0 0.0
    %357 = vmatmul.mubr.f32.gmra.mrb[0].mxu0 %v149
    %v358 = vpop.f32.mrb[0].mxu0
    %v359 = vadd.f32 %v79, %v358
    %v360 = vpop.f32.mrb[0].mxu0
    %361 = vmatprep.mubr.f32.mxu0 0.0
    %362 = vmatmul.mubr.f32.gmra.mrb[0].mxu0 %v152
    %v363 = vpop.f32.mrb[0].mxu0
    %v364 = vadd.f32 %v79, %v363
    %v365 = vpop.f32.mrb[0].mxu0
    %366 = vmatprep.mubr.f32.mxu0 0.0
    %367 = vmatmul.mubr.f32.gmra.mrb[0].mxu0 %v155
    %v368 = vpop.f32.mrb[0].mxu0
    %v369 = vadd.f32 %v79, %v368
    %v370 = vpop.f32.mrb[0].mxu0
    %371 = vmatprep.mubr.f32.mxu0 0.0
    %372 = vmatmul.mubr.f32.gmra.mrb[0].mxu0 %v158
    %v373 = vpop.f32.mrb[0].mxu0
    %v374 = vadd.f32 %v79, %v373
    %v375 = vpop.f32.mrb[0].mxu0
    %376 = vmatprep.mubr.f32.mxu0 0.0
    %377 = vmatmul.mubr.f32.gmra.mrb[0].mxu0 %v161
    %v378 = vpop.f32.mrb[0].mxu0
    %v379 = vadd.f32 %v79, %v378
    %v380 = vpop.f32.mrb[0].mxu0
    %381 = vmatprep.mubr.f32.mxu0 0.0
    %382 = vmatmul.mubr.f32.gmra.mrb[0].mxu0 %v164
    %v383 = vpop.f32.mrb[0].mxu0
    %v384 = vadd.f32 %v79, %v383
    %v385 = vpop.f32.mrb[0].mxu0
    %386 = vmatprep.mubr.f32.mxu0 0.0
    %387 = vmatmul.mubr.f32.gmra.mrb[0].mxu0 %v167
    %v388 = vpop.f32.mrb[0].mxu0
    %v389 = vadd.f32 %v79, %v388
    %v390 = vpop.f32.mrb[0].mxu0
    %391 = vmatprep.mubr.f32.mxu0 0.0
    %392 = vmatmul.mubr.f32.gmra.mrb[0].mxu0 %v170
    %v393 = vpop.f32.mrb[0].mxu0
    %v394 = vadd.f32 %v79, %v393
    %v395 = vpop.f32.mrb[0].mxu0
    %396 = vmatprep.mubr.f32.mxu0 0.0
    %397 = vmatmul.mubr.f32.gmra.mrb[0].mxu0 %v173
    %v398 = vpop.f32.mrb[0].mxu0
    %v399 = vadd.f32 %v79, %v398
    %v400 = vpop.f32.mrb[0].mxu0
    %401 = vmatprep.mubr.f32.mxu0 0.0
    %402 = vmatmul.mubr.f32.gmra.mrb[0].mxu0 %v176
    %v403 = vpop.f32.mrb[0].mxu0
    %v404 = vadd.f32 %v79, %v403
    %v405 = vpop.f32.mrb[0].mxu0
    %406 = vdwg.mxu0
    %v407 = vmax.f32 %v249, 0.0
    %v408 = vmax.f32 %v254, 0.0
    %v409 = vmax.f32 %v259, 0.0
    %v410 = vmax.f32 %v264, 0.0
    %v411 = vmax.f32 %v269, 0.0
    %v412 = vmax.f32 %v274, 0.0
    %v413 = vmax.f32 %v279, 0.0
    %v414 = vmax.f32 %v284, 0.0
    %v415 = vmax.f32 %v289, 0.0
    %v416 = vmax.f32 %v294, 0.0
    %v417 = vmax.f32 %v299, 0.0
    %v418 = vmax.f32 %v304, 0.0
    %v419 = vmax.f32 %v309, 0.0
    %v420 = vmax.f32 %v314, 0.0
    %v421 = vmax.f32 %v319, 0.0
    %v422 = vmax.f32 %v324, 0.0
    %v423 = vmax.f32 %v329, 0.0
    %v424 = vmax.f32 %v334, 0.0
    %v425 = vmax.f32 %v339, 0.0
    %v426 = vmax.f32 %v344, 0.0
    %v427 = vmax.f32 %v349, 0.0
    %v428 = vmax.f32 %v354, 0.0
    %v429 = vmax.f32 %v359, 0.0
    %v430 = vmax.f32 %v364, 0.0
    %v431 = vmax.f32 %v369, 0.0
    %v432 = vmax.f32 %v374, 0.0
    %v433 = vmax.f32 %v379, 0.0
    %v434 = vmax.f32 %v384, 0.0
    %v435 = vmax.f32 %v389, 0.0
    %v436 = vmax.f32 %v394, 0.0
    %v437 = vmax.f32 %v399, 0.0
    %v438 = vmax.f32 %v404, 0.0
    %v439 = vld [vmem:[%s3] sm:$0xff]
    %v440 = vld [vmem:[%s3 + $0x8] sm:$0xff]
    %v441 = vld [vmem:[%s3 + $0x10] sm:$0xff]
    %v442 = vld [vmem:[%s3 + $0x18] sm:$0xff]
    %v443 = vld [vmem:[%s4] sm:$0x1]
    %v445 = vlaneseq
    %v446 = vshrl.u32 %v445, 7
    %v447 = vsub.s32 0, %v446
    %v448 = vrot.slane %v443, %v447
    %vm450 = vcmask 261120
    %v452 = vsel %vm450, %v407, 0
    %v455 = vsel %vm450, %v408, 0
    %v458 = vsel %vm450, %v409, 0
    %v461 = vsel %vm450, %v410, 0
    %v464 = vsel %vm450, %v411, 0
    %v467 = vsel %vm450, %v412, 0
    %v470 = vsel %vm450, %v413, 0
    %v473 = vsel %vm450, %v414, 0
    %v476 = vsel %vm450, %v415, 0
    %v479 = vsel %vm450, %v416, 0
    %v482 = vsel %vm450, %v417, 0
    %v485 = vsel %vm450, %v418, 0
    %v488 = vsel %vm450, %v419, 0
    %v491 = vsel %vm450, %v420, 0
    %v494 = vsel %vm450, %v421, 0
    %v497 = vsel %vm450, %v422, 0
    %v500 = vsel %vm450, %v423, 0
    %v503 = vsel %vm450, %v424, 0
    %v506 = vsel %vm450, %v425, 0
    %v509 = vsel %vm450, %v426, 0
    %v512 = vsel %vm450, %v427, 0
    %v515 = vsel %vm450, %v428, 0
    %v518 = vsel %vm450, %v429, 0
    %v521 = vsel %vm450, %v430, 0
    %v524 = vsel %vm450, %v431, 0
    %v527 = vsel %vm450, %v432, 0
    %v530 = vsel %vm450, %v433, 0
    %v533 = vsel %vm450, %v434, 0
    %v536 = vsel %vm450, %v435, 0
    %v539 = vsel %vm450, %v436, 0
    %v542 = vsel %vm450, %v437, 0
    %v545 = vsel %vm450, %v438, 0
    %547 = vmatprep.subr.mxu0 0.0
    %548 = vmatpush1.msra.mxu0 %v439
    %549 = vmatprep.subr.mxu0 0.0
    %550 = vmatpush1.msra.mxu0 %v440
    %551 = vmatprep.subr.mxu0 0.0
    %552 = vmatpush1.msra.mxu0 %v441
    %553 = vmatprep.subr.mxu0 0.0
    %554 = vmatpush1.msra.mxu0 %v442
    %555 = vmatprep.subr.mxu0 0.0
    %556 = vmatpush1.msra.mxu0 0.0
    %557 = vmatprep.subr.mxu0 0.0
    %558 = vmatpush1.msra.mxu0 0.0
    %559 = vmatprep.subr.mxu0 0.0
    %560 = vmatpush1.msra.mxu0 0.0
    %561 = vmatprep.subr.mxu0 0.0
    %562 = vmatpush1.msra.mxu0 0.0
    %563 = vmatprep.subr.mxu0 0.0
    %564 = vmatpush1.msra.mxu0 0.0
    %565 = vmatprep.subr.mxu0 0.0
    %566 = vmatpush1.msra.mxu0 0.0
    %567 = vmatprep.subr.mxu0 0.0
    %568 = vmatpush1.msra.mxu0 0.0
    %569 = vmatprep.subr.mxu0 0.0
    %570 = vmatpush1.msra.mxu0 0.0
    %571 = vmatprep.subr.mxu0 0.0
    %572 = vmatpush1.msra.mxu0 0.0
    %573 = vmatprep.subr.mxu0 0.0
    %574 = vmatpush1.msra.mxu0 0.0
    %575 = vmatprep.subr.mxu0 0.0
    %576 = vmatpush1.msra.mxu0 0.0
    %577 = vmatprep.subr.mxu0 0.0
    %578 = vmatpush1.msra.mxu0 0.0
    %579 = vmatprep.subr.mxu0 0.0
    %580 = vmatpush1.msra.mxu0 0.0
    %581 = vmatprep.subr.mxu0 0.0
    %582 = vmatpush1.msra.mxu0 0.0
    %583 = vmatprep.subr.mxu0 0.0
    %584 = vmatpush1.msra.mxu0 0.0
    %585 = vmatprep.subr.mxu0 0.0
    %586 = vmatpush1.msra.mxu0 0.0
    %587 = vmatprep.subr.mxu0 0.0
    %588 = vmatpush1.msra.mxu0 0.0
    %589 = vmatprep.subr.mxu0 0.0
    %590 = vmatpush1.msra.mxu0 0.0
    %591 = vmatprep.subr.mxu0 0.0
    %592 = vmatpush1.msra.mxu0 0.0
    %593 = vmatprep.subr.mxu0 0.0
    %594 = vmatpush1.msra.mxu0 0.0
    %595 = vmatprep.subr.mxu0 0.0
    %596 = vmatpush1.msra.mxu0 0.0
    %597 = vmatprep.subr.mxu0 0.0
    %598 = vmatpush1.msra.mxu0 0.0
    %599 = vmatprep.subr.mxu0 0.0
    %600 = vmatpush1.msra.mxu0 0.0
    %601 = vmatprep.subr.mxu0 0.0
    %602 = vmatpush1.msra.mxu0 0.0
    %603 = vmatprep.subr.mxu0 0.0
    %604 = vmatpush1.msra.mxu0 0.0
    %605 = vmatprep.subr.mxu0 0.0
    %606 = vmatpush1.msra.mxu0 0.0
    %607 = vmatprep.subr.mxu0 0.0
    %608 = vmatpush1.msra.mxu0 0.0
    %609 = vmatprep.subr.mxu0 0.0
    %610 = vmatpush1.msra.mxu0 0.0
    %611 = vmatprep.mubr.f32.mxu0 0.0
    %612 = vmatmul.mubr.f32.gmra.mrb[0].mxu0 %v452
    %v613 = vpop.f32.mrb[0].mxu0
    %v614 = vadd.f32 %v448, %v613
    %v615 = vpop.f32.mrb[0].mxu0
    %616 = vmatprep.mubr.f32.mxu0 0.0
    %617 = vmatmul.mubr.f32.gmra.mrb[0].mxu0 %v455
    %v618 = vpop.f32.mrb[0].mxu0
    %v619 = vadd.f32 %v448, %v618
    %v620 = vpop.f32.mrb[0].mxu0
    %621 = vmatprep.mubr.f32.mxu0 0.0
    %622 = vmatmul.mubr.f32.gmra.mrb[0].mxu0 %v458
    %v623 = vpop.f32.mrb[0].mxu0
    %v624 = vadd.f32 %v448, %v623
    %v625 = vpop.f32.mrb[0].mxu0
    %626 = vmatprep.mubr.f32.mxu0 0.0
    %627 = vmatmul.mubr.f32.gmra.mrb[0].mxu0 %v461
    %v628 = vpop.f32.mrb[0].mxu0
    %v629 = vadd.f32 %v448, %v628
    %v630 = vpop.f32.mrb[0].mxu0
    %631 = vmatprep.mubr.f32.mxu0 0.0
    %632 = vmatmul.mubr.f32.gmra.mrb[0].mxu0 %v464
    %v633 = vpop.f32.mrb[0].mxu0
    %v634 = vadd.f32 %v448, %v633
    %v635 = vpop.f32.mrb[0].mxu0
    %636 = vmatprep.mubr.f32.mxu0 0.0
    %637 = vmatmul.mubr.f32.gmra.mrb[0].mxu0 %v467
    %v638 = vpop.f32.mrb[0].mxu0
    %v639 = vadd.f32 %v448, %v638
    %v640 = vpop.f32.mrb[0].mxu0
    %641 = vmatprep.mubr.f32.mxu0 0.0
    %642 = vmatmul.mubr.f32.gmra.mrb[0].mxu0 %v470
    %v643 = vpop.f32.mrb[0].mxu0
    %v644 = vadd.f32 %v448, %v643
    %v645 = vpop.f32.mrb[0].mxu0
    %646 = vmatprep.mubr.f32.mxu0 0.0
    %647 = vmatmul.mubr.f32.gmra.mrb[0].mxu0 %v473
    %v648 = vpop.f32.mrb[0].mxu0
    %v649 = vadd.f32 %v448, %v648
    %v650 = vpop.f32.mrb[0].mxu0
    %651 = vmatprep.mubr.f32.mxu0 0.0
    %652 = vmatmul.mubr.f32.gmra.mrb[0].mxu0 %v476
    %v653 = vpop.f32.mrb[0].mxu0
    %v654 = vadd.f32 %v448, %v653
    %v655 = vpop.f32.mrb[0].mxu0
    %656 = vmatprep.mubr.f32.mxu0 0.0
    %657 = vmatmul.mubr.f32.gmra.mrb[0].mxu0 %v479
    %v658 = vpop.f32.mrb[0].mxu0
    %v659 = vadd.f32 %v448, %v658
    %v660 = vpop.f32.mrb[0].mxu0
    %661 = vmatprep.mubr.f32.mxu0 0.0
    %662 = vmatmul.mubr.f32.gmra.mrb[0].mxu0 %v482
    %v663 = vpop.f32.mrb[0].mxu0
    %v664 = vadd.f32 %v448, %v663
    %v665 = vpop.f32.mrb[0].mxu0
    %666 = vmatprep.mubr.f32.mxu0 0.0
    %667 = vmatmul.mubr.f32.gmra.mrb[0].mxu0 %v485
    %v668 = vpop.f32.mrb[0].mxu0
    %v669 = vadd.f32 %v448, %v668
    %v670 = vpop.f32.mrb[0].mxu0
    %671 = vmatprep.mubr.f32.mxu0 0.0
    %672 = vmatmul.mubr.f32.gmra.mrb[0].mxu0 %v488
    %v673 = vpop.f32.mrb[0].mxu0
    %v674 = vadd.f32 %v448, %v673
    %v675 = vpop.f32.mrb[0].mxu0
    %676 = vmatprep.mubr.f32.mxu0 0.0
    %677 = vmatmul.mubr.f32.gmra.mrb[0].mxu0 %v491
    %v678 = vpop.f32.mrb[0].mxu0
    %v679 = vadd.f32 %v448, %v678
    %v680 = vpop.f32.mrb[0].mxu0
    %681 = vmatprep.mubr.f32.mxu0 0.0
    %682 = vmatmul.mubr.f32.gmra.mrb[0].mxu0 %v494
    %v683 = vpop.f32.mrb[0].mxu0
    %v684 = vadd.f32 %v448, %v683
    %v685 = vpop.f32.mrb[0].mxu0
    %686 = vmatprep.mubr.f32.mxu0 0.0
    %687 = vmatmul.mubr.f32.gmra.mrb[0].mxu0 %v497
    %v688 = vpop.f32.mrb[0].mxu0
    %v689 = vadd.f32 %v448, %v688
    %v690 = vpop.f32.mrb[0].mxu0
    %691 = vmatprep.mubr.f32.mxu0 0.0
    %692 = vmatmul.mubr.f32.gmra.mrb[0].mxu0 %v500
    %v693 = vpop.f32.mrb[0].mxu0
    %v694 = vadd.f32 %v448, %v693
    %v695 = vpop.f32.mrb[0].mxu0
    %696 = vmatprep.mubr.f32.mxu0 0.0
    %697 = vmatmul.mubr.f32.gmra.mrb[0].mxu0 %v503
    %v698 = vpop.f32.mrb[0].mxu0
    %v699 = vadd.f32 %v448, %v698
    %v700 = vpop.f32.mrb[0].mxu0
    %701 = vmatprep.mubr.f32.mxu0 0.0
    %702 = vmatmul.mubr.f32.gmra.mrb[0].mxu0 %v506
    %v703 = vpop.f32.mrb[0].mxu0
    %v704 = vadd.f32 %v448, %v703
    %v705 = vpop.f32.mrb[0].mxu0
    %706 = vmatprep.mubr.f32.mxu0 0.0
    %707 = vmatmul.mubr.f32.gmra.mrb[0].mxu0 %v509
    %v708 = vpop.f32.mrb[0].mxu0
    %v709 = vadd.f32 %v448, %v708
    %v710 = vpop.f32.mrb[0].mxu0
    %711 = vmatprep.mubr.f32.mxu0 0.0
    %712 = vmatmul.mubr.f32.gmra.mrb[0].mxu0 %v512
    %v713 = vpop.f32.mrb[0].mxu0
    %v714 = vadd.f32 %v448, %v713
    %v715 = vpop.f32.mrb[0].mxu0
    %716 = vmatprep.mubr.f32.mxu0 0.0
    %717 = vmatmul.mubr.f32.gmra.mrb[0].mxu0 %v515
    %v718 = vpop.f32.mrb[0].mxu0
    %v719 = vadd.f32 %v448, %v718
    %v720 = vpop.f32.mrb[0].mxu0
    %721 = vmatprep.mubr.f32.mxu0 0.0
    %722 = vmatmul.mubr.f32.gmra.mrb[0].mxu0 %v518
    %v723 = vpop.f32.mrb[0].mxu0
    %v724 = vadd.f32 %v448, %v723
    %v725 = vpop.f32.mrb[0].mxu0
    %726 = vmatprep.mubr.f32.mxu0 0.0
    %727 = vmatmul.mubr.f32.gmra.mrb[0].mxu0 %v521
    %v728 = vpop.f32.mrb[0].mxu0
    %v729 = vadd.f32 %v448, %v728
    %v730 = vpop.f32.mrb[0].mxu0
    %731 = vmatprep.mubr.f32.mxu0 0.0
    %732 = vmatmul.mubr.f32.gmra.mrb[0].mxu0 %v524
    %v733 = vpop.f32.mrb[0].mxu0
    %v734 = vadd.f32 %v448, %v733
    %v735 = vpop.f32.mrb[0].mxu0
    %736 = vmatprep.mubr.f32.mxu0 0.0
    %737 = vmatmul.mubr.f32.gmra.mrb[0].mxu0 %v527
    %v738 = vpop.f32.mrb[0].mxu0
    %v739 = vadd.f32 %v448, %v738
    %v740 = vpop.f32.mrb[0].mxu0
    %741 = vmatprep.mubr.f32.mxu0 0.0
    %742 = vmatmul.mubr.f32.gmra.mrb[0].mxu0 %v530
    %v743 = vpop.f32.mrb[0].mxu0
    %v744 = vadd.f32 %v448, %v743
    %v745 = vpop.f32.mrb[0].mxu0
    %746 = vmatprep.mubr.f32.mxu0 0.0
    %747 = vmatmul.mubr.f32.gmra.mrb[0].mxu0 %v533
    %v748 = vpop.f32.mrb[0].mxu0
    %v749 = vadd.f32 %v448, %v748
    %v750 = vpop.f32.mrb[0].mxu0
    %751 = vmatprep.mubr.f32.mxu0 0.0
    %752 = vmatmul.mubr.f32.gmra.mrb[0].mxu0 %v536
    %v753 = vpop.f32.mrb[0].mxu0
    %v754 = vadd.f32 %v448, %v753
    %v755 = vpop.f32.mrb[0].mxu0
    %756 = vmatprep.mubr.f32.mxu0 0.0
    %757 = vmatmul.mubr.f32.gmra.mrb[0].mxu0 %v539
    %v758 = vpop.f32.mrb[0].mxu0
    %v759 = vadd.f32 %v448, %v758
    %v760 = vpop.f32.mrb[0].mxu0
    %761 = vmatprep.mubr.f32.mxu0 0.0
    %762 = vmatmul.mubr.f32.gmra.mrb[0].mxu0 %v542
    %v763 = vpop.f32.mrb[0].mxu0
    %v764 = vadd.f32 %v448, %v763
    %v765 = vpop.f32.mrb[0].mxu0
    %766 = vmatprep.mubr.f32.mxu0 0.0
    %767 = vmatmul.mubr.f32.gmra.mrb[0].mxu0 %v545
    %v768 = vpop.f32.mrb[0].mxu0
    %v769 = vadd.f32 %v448, %v768
    %v770 = vpop.f32.mrb[0].mxu0
    %771 = vdwg.mxu0
    %v772 = vmax.f32 %v614, 0.0
    %v773 = vmax.f32 %v619, 0.0
    %v774 = vmax.f32 %v624, 0.0
    %v775 = vmax.f32 %v629, 0.0
    %v776 = vmax.f32 %v634, 0.0
    %v777 = vmax.f32 %v639, 0.0
    %v778 = vmax.f32 %v644, 0.0
    %v779 = vmax.f32 %v649, 0.0
    %v780 = vmax.f32 %v654, 0.0
    %v781 = vmax.f32 %v659, 0.0
    %v782 = vmax.f32 %v664, 0.0
    %v783 = vmax.f32 %v669, 0.0
    %v784 = vmax.f32 %v674, 0.0
    %v785 = vmax.f32 %v679, 0.0
    %v786 = vmax.f32 %v684, 0.0
    %v787 = vmax.f32 %v689, 0.0
    %v788 = vmax.f32 %v694, 0.0
    %v789 = vmax.f32 %v699, 0.0
    %v790 = vmax.f32 %v704, 0.0
    %v791 = vmax.f32 %v709, 0.0
    %v792 = vmax.f32 %v714, 0.0
    %v793 = vmax.f32 %v719, 0.0
    %v794 = vmax.f32 %v724, 0.0
    %v795 = vmax.f32 %v729, 0.0
    %v796 = vmax.f32 %v734, 0.0
    %v797 = vmax.f32 %v739, 0.0
    %v798 = vmax.f32 %v744, 0.0
    %v799 = vmax.f32 %v749, 0.0
    %v800 = vmax.f32 %v754, 0.0
    %v801 = vmax.f32 %v759, 0.0
    %v802 = vmax.f32 %v764, 0.0
    %v803 = vmax.f32 %v769, 0.0
    %v804 = vld [vmem:[%s5] sm:$0xff]
    %v805 = vld [vmem:[%s5 + $0x8] sm:$0xff]
    %v806 = vld [vmem:[%s5 + $0x10] sm:$0xff]
    %v807 = vld [vmem:[%s5 + $0x18] sm:$0xff]
    %v808 = vld [vmem:[%s5 + $0x20] sm:$0xff]
    %v809 = vld [vmem:[%s5 + $0x28] sm:$0xff]
    %v810 = vld [vmem:[%s6] sm:$0x1]
    %v812 = vlaneseq
    %v813 = vshrl.u32 %v812, 7
    %v814 = vsub.s32 0, %v813
    %v815 = vrot.slane %v810, %v814
    %vm817 = vcmask 392192
    %v819 = vsel %vm817, %v772, 0
    %v822 = vsel %vm817, %v773, 0
    %v825 = vsel %vm817, %v774, 0
    %v828 = vsel %vm817, %v775, 0
    %v831 = vsel %vm817, %v776, 0
    %v834 = vsel %vm817, %v777, 0
    %v837 = vsel %vm817, %v778, 0
    %v840 = vsel %vm817, %v779, 0
    %v843 = vsel %vm817, %v780, 0
    %v846 = vsel %vm817, %v781, 0
    %v849 = vsel %vm817, %v782, 0
    %v852 = vsel %vm817, %v783, 0
    %v855 = vsel %vm817, %v784, 0
    %v858 = vsel %vm817, %v785, 0
    %v861 = vsel %vm817, %v786, 0
    %v864 = vsel %vm817, %v787, 0
    %v867 = vsel %vm817, %v788, 0
    %v870 = vsel %vm817, %v789, 0
    %v873 = vsel %vm817, %v790, 0
    %v876 = vsel %vm817, %v791, 0
    %v879 = vsel %vm817, %v792, 0
    %v882 = vsel %vm817, %v793, 0
    %v885 = vsel %vm817, %v794, 0
    %v888 = vsel %vm817, %v795, 0
    %v891 = vsel %vm817, %v796, 0
    %v894 = vsel %vm817, %v797, 0
    %v897 = vsel %vm817, %v798, 0
    %v900 = vsel %vm817, %v799, 0
    %v903 = vsel %vm817, %v800, 0
    %v906 = vsel %vm817, %v801, 0
    %v909 = vsel %vm817, %v802, 0
    %v912 = vsel %vm817, %v803, 0
    %914 = vmatprep.subr.mxu0 0.0
    %915 = vmatpush1.msra.mxu0 %v804
    %916 = vmatprep.subr.mxu0 0.0
    %917 = vmatpush1.msra.mxu0 %v805
    %918 = vmatprep.subr.mxu0 0.0
    %919 = vmatpush1.msra.mxu0 %v806
    %920 = vmatprep.subr.mxu0 0.0
    %921 = vmatpush1.msra.mxu0 %v807
    %922 = vmatprep.subr.mxu0 0.0
    %923 = vmatpush1.msra.mxu0 %v808
    %924 = vmatprep.subr.mxu0 0.0
    %925 = vmatpush1.msra.mxu0 %v809
    %926 = vmatprep.subr.mxu0 0.0
    %927 = vmatpush1.msra.mxu0 0.0
    %928 = vmatprep.subr.mxu0 0.0
    %929 = vmatpush1.msra.mxu0 0.0
    %930 = vmatprep.subr.mxu0 0.0
    %931 = vmatpush1.msra.mxu0 0.0
    %932 = vmatprep.subr.mxu0 0.0
    %933 = vmatpush1.msra.mxu0 0.0
    %934 = vmatprep.subr.mxu0 0.0
    %935 = vmatpush1.msra.mxu0 0.0
    %936 = vmatprep.subr.mxu0 0.0
    %937 = vmatpush1.msra.mxu0 0.0
    %938 = vmatprep.subr.mxu0 0.0
    %939 = vmatpush1.msra.mxu0 0.0
    %940 = vmatprep.subr.mxu0 0.0
    %941 = vmatpush1.msra.mxu0 0.0
    %942 = vmatprep.subr.mxu0 0.0
    %943 = vmatpush1.msra.mxu0 0.0
    %944 = vmatprep.subr.mxu0 0.0
    %945 = vmatpush1.msra.mxu0 0.0
    %946 = vmatprep.subr.mxu0 0.0
    %947 = vmatpush1.msra.mxu0 0.0
    %948 = vmatprep.subr.mxu0 0.0
    %949 = vmatpush1.msra.mxu0 0.0
    %950 = vmatprep.subr.mxu0 0.0
    %951 = vmatpush1.msra.mxu0 0.0
    %952 = vmatprep.subr.mxu0 0.0
    %953 = vmatpush1.msra.mxu0 0.0
    %954 = vmatprep.subr.mxu0 0.0
    %955 = vmatpush1.msra.mxu0 0.0
    %956 = vmatprep.subr.mxu0 0.0
    %957 = vmatpush1.msra.mxu0 0.0
    %958 = vmatprep.subr.mxu0 0.0
    %959 = vmatpush1.msra.mxu0 0.0
    %960 = vmatprep.subr.mxu0 0.0
    %961 = vmatpush1.msra.mxu0 0.0
    %962 = vmatprep.subr.mxu0 0.0
    %963 = vmatpush1.msra.mxu0 0.0
    %964 = vmatprep.subr.mxu0 0.0
    %965 = vmatpush1.msra.mxu0 0.0
    %966 = vmatprep.subr.mxu0 0.0
    %967 = vmatpush1.msra.mxu0 0.0
    %968 = vmatprep.subr.mxu0 0.0
    %969 = vmatpush1.msra.mxu0 0.0
    %970 = vmatprep.subr.mxu0 0.0
    %971 = vmatpush1.msra.mxu0 0.0
    %972 = vmatprep.subr.mxu0 0.0
    %973 = vmatpush1.msra.mxu0 0.0
    %974 = vmatprep.subr.mxu0 0.0
    %975 = vmatpush1.msra.mxu0 0.0
    %976 = vmatprep.subr.mxu0 0.0
    %977 = vmatpush1.msra.mxu0 0.0
    %978 = vmatprep.mubr.f32.mxu0 0.0
    %979 = vmatmul.mubr.f32.gmra.mrb[0].mxu0 %v819
    %v980 = vpop.f32.mrb[0].mxu0
    %v981 = vadd.f32 %v815, %v980
    %v982 = vpop.f32.mrb[0].mxu0
    %983 = vmatprep.mubr.f32.mxu0 0.0
    %984 = vmatmul.mubr.f32.gmra.mrb[0].mxu0 %v822
    %v985 = vpop.f32.mrb[0].mxu0
    %v986 = vadd.f32 %v815, %v985
    %v987 = vpop.f32.mrb[0].mxu0
    %988 = vmatprep.mubr.f32.mxu0 0.0
    %989 = vmatmul.mubr.f32.gmra.mrb[0].mxu0 %v825
    %v990 = vpop.f32.mrb[0].mxu0
    %v991 = vadd.f32 %v815, %v990
    %v992 = vpop.f32.mrb[0].mxu0
    %993 = vmatprep.mubr.f32.mxu0 0.0
    %994 = vmatmul.mubr.f32.gmra.mrb[0].mxu0 %v828
    %v995 = vpop.f32.mrb[0].mxu0
    %v996 = vadd.f32 %v815, %v995
    %v997 = vpop.f32.mrb[0].mxu0
    %998 = vmatprep.mubr.f32.mxu0 0.0
    %999 = vmatmul.mubr.f32.gmra.mrb[0].mxu0 %v831
    %v1000 = vpop.f32.mrb[0].mxu0
    %v1001 = vadd.f32 %v815, %v1000
    %v1002 = vpop.f32.mrb[0].mxu0
    %1003 = vmatprep.mubr.f32.mxu0 0.0
    %1004 = vmatmul.mubr.f32.gmra.mrb[0].mxu0 %v834
    %v1005 = vpop.f32.mrb[0].mxu0
    %v1006 = vadd.f32 %v815, %v1005
    %v1007 = vpop.f32.mrb[0].mxu0
    %1008 = vmatprep.mubr.f32.mxu0 0.0
    %1009 = vmatmul.mubr.f32.gmra.mrb[0].mxu0 %v837
    %v1010 = vpop.f32.mrb[0].mxu0
    %v1011 = vadd.f32 %v815, %v1010
    %v1012 = vpop.f32.mrb[0].mxu0
    %1013 = vmatprep.mubr.f32.mxu0 0.0
    %1014 = vmatmul.mubr.f32.gmra.mrb[0].mxu0 %v840
    %v1015 = vpop.f32.mrb[0].mxu0
    %v1016 = vadd.f32 %v815, %v1015
    %v1017 = vpop.f32.mrb[0].mxu0
    %1018 = vmatprep.mubr.f32.mxu0 0.0
    %1019 = vmatmul.mubr.f32.gmra.mrb[0].mxu0 %v843
    %v1020 = vpop.f32.mrb[0].mxu0
    %v1021 = vadd.f32 %v815, %v1020
    %v1022 = vpop.f32.mrb[0].mxu0
    %1023 = vmatprep.mubr.f32.mxu0 0.0
    %1024 = vmatmul.mubr.f32.gmra.mrb[0].mxu0 %v846
    %v1025 = vpop.f32.mrb[0].mxu0
    %v1026 = vadd.f32 %v815, %v1025
    %v1027 = vpop.f32.mrb[0].mxu0
    %1028 = vmatprep.mubr.f32.mxu0 0.0
    %1029 = vmatmul.mubr.f32.gmra.mrb[0].mxu0 %v849
    %v1030 = vpop.f32.mrb[0].mxu0
    %v1031 = vadd.f32 %v815, %v1030
    %v1032 = vpop.f32.mrb[0].mxu0
    %1033 = vmatprep.mubr.f32.mxu0 0.0
    %1034 = vmatmul.mubr.f32.gmra.mrb[0].mxu0 %v852
    %v1035 = vpop.f32.mrb[0].mxu0
    %v1036 = vadd.f32 %v815, %v1035
    %v1037 = vpop.f32.mrb[0].mxu0
    %1038 = vmatprep.mubr.f32.mxu0 0.0
    %1039 = vmatmul.mubr.f32.gmra.mrb[0].mxu0 %v855
    %v1040 = vpop.f32.mrb[0].mxu0
    %v1041 = vadd.f32 %v815, %v1040
    %v1042 = vpop.f32.mrb[0].mxu0
    %1043 = vmatprep.mubr.f32.mxu0 0.0
    %1044 = vmatmul.mubr.f32.gmra.mrb[0].mxu0 %v858
    %v1045 = vpop.f32.mrb[0].mxu0
    %v1046 = vadd.f32 %v815, %v1045
    %v1047 = vpop.f32.mrb[0].mxu0
    %1048 = vmatprep.mubr.f32.mxu0 0.0
    %1049 = vmatmul.mubr.f32.gmra.mrb[0].mxu0 %v861
    %v1050 = vpop.f32.mrb[0].mxu0
    %v1051 = vadd.f32 %v815, %v1050
    %v1052 = vpop.f32.mrb[0].mxu0
    %1053 = vmatprep.mubr.f32.mxu0 0.0
    %1054 = vmatmul.mubr.f32.gmra.mrb[0].mxu0 %v864
    %v1055 = vpop.f32.mrb[0].mxu0
    %v1056 = vadd.f32 %v815, %v1055
    %v1057 = vpop.f32.mrb[0].mxu0
    %1058 = vmatprep.mubr.f32.mxu0 0.0
    %1059 = vmatmul.mubr.f32.gmra.mrb[0].mxu0 %v867
    %v1060 = vpop.f32.mrb[0].mxu0
    %v1061 = vadd.f32 %v815, %v1060
    %v1062 = vpop.f32.mrb[0].mxu0
    %1063 = vmatprep.mubr.f32.mxu0 0.0
    %1064 = vmatmul.mubr.f32.gmra.mrb[0].mxu0 %v870
    %v1065 = vpop.f32.mrb[0].mxu0
    %v1066 = vadd.f32 %v815, %v1065
    %v1067 = vpop.f32.mrb[0].mxu0
    %1068 = vmatprep.mubr.f32.mxu0 0.0
    %1069 = vmatmul.mubr.f32.gmra.mrb[0].mxu0 %v873
    %v1070 = vpop.f32.mrb[0].mxu0
    %v1071 = vadd.f32 %v815, %v1070
    %v1072 = vpop.f32.mrb[0].mxu0
    %1073 = vmatprep.mubr.f32.mxu0 0.0
    %1074 = vmatmul.mubr.f32.gmra.mrb[0].mxu0 %v876
    %v1075 = vpop.f32.mrb[0].mxu0
    %v1076 = vadd.f32 %v815, %v1075
    %v1077 = vpop.f32.mrb[0].mxu0
    %1078 = vmatprep.mubr.f32.mxu0 0.0
    %1079 = vmatmul.mubr.f32.gmra.mrb[0].mxu0 %v879
    %v1080 = vpop.f32.mrb[0].mxu0
    %v1081 = vadd.f32 %v815, %v1080
    %v1082 = vpop.f32.mrb[0].mxu0
    %1083 = vmatprep.mubr.f32.mxu0 0.0
    %1084 = vmatmul.mubr.f32.gmra.mrb[0].mxu0 %v882
    %v1085 = vpop.f32.mrb[0].mxu0
    %v1086 = vadd.f32 %v815, %v1085
    %v1087 = vpop.f32.mrb[0].mxu0
    %1088 = vmatprep.mubr.f32.mxu0 0.0
    %1089 = vmatmul.mubr.f32.gmra.mrb[0].mxu0 %v885
    %v1090 = vpop.f32.mrb[0].mxu0
    %v1091 = vadd.f32 %v815, %v1090
    %v1092 = vpop.f32.mrb[0].mxu0
    %1093 = vmatprep.mubr.f32.mxu0 0.0
    %1094 = vmatmul.mubr.f32.gmra.mrb[0].mxu0 %v888
    %v1095 = vpop.f32.mrb[0].mxu0
    %v1096 = vadd.f32 %v815, %v1095
    %v1097 = vpop.f32.mrb[0].mxu0
    %1098 = vmatprep.mubr.f32.mxu0 0.0
    %1099 = vmatmul.mubr.f32.gmra.mrb[0].mxu0 %v891
    %v1100 = vpop.f32.mrb[0].mxu0
    %v1101 = vadd.f32 %v815, %v1100
    %v1102 = vpop.f32.mrb[0].mxu0
    %1103 = vmatprep.mubr.f32.mxu0 0.0
    %1104 = vmatmul.mubr.f32.gmra.mrb[0].mxu0 %v894
    %v1105 = vpop.f32.mrb[0].mxu0
    %v1106 = vadd.f32 %v815, %v1105
    %v1107 = vpop.f32.mrb[0].mxu0
    %1108 = vmatprep.mubr.f32.mxu0 0.0
    %1109 = vmatmul.mubr.f32.gmra.mrb[0].mxu0 %v897
    %v1110 = vpop.f32.mrb[0].mxu0
    %v1111 = vadd.f32 %v815, %v1110
    %v1112 = vpop.f32.mrb[0].mxu0
    %1113 = vmatprep.mubr.f32.mxu0 0.0
    %1114 = vmatmul.mubr.f32.gmra.mrb[0].mxu0 %v900
    %v1115 = vpop.f32.mrb[0].mxu0
    %v1116 = vadd.f32 %v815, %v1115
    %v1117 = vpop.f32.mrb[0].mxu0
    %1118 = vmatprep.mubr.f32.mxu0 0.0
    %1119 = vmatmul.mubr.f32.gmra.mrb[0].mxu0 %v903
    %v1120 = vpop.f32.mrb[0].mxu0
    %v1121 = vadd.f32 %v815, %v1120
    %v1122 = vpop.f32.mrb[0].mxu0
    %1123 = vmatprep.mubr.f32.mxu0 0.0
    %1124 = vmatmul.mubr.f32.gmra.mrb[0].mxu0 %v906
    %v1125 = vpop.f32.mrb[0].mxu0
    %v1126 = vadd.f32 %v815, %v1125
    %v1127 = vpop.f32.mrb[0].mxu0
    %1128 = vmatprep.mubr.f32.mxu0 0.0
    %1129 = vmatmul.mubr.f32.gmra.mrb[0].mxu0 %v909
    %v1130 = vpop.f32.mrb[0].mxu0
    %v1131 = vadd.f32 %v815, %v1130
    %v1132 = vpop.f32.mrb[0].mxu0
    %1133 = vmatprep.mubr.f32.mxu0 0.0
    %1134 = vmatmul.mubr.f32.gmra.mrb[0].mxu0 %v912
    %v1135 = vpop.f32.mrb[0].mxu0
    %v1136 = vadd.f32 %v815, %v1135
    %v1137 = vpop.f32.mrb[0].mxu0
    %1138 = vdwg.mxu0
    %v1139 = vmax.f32 %v981, 0.0
    %v1140 = vmax.f32 %v986, 0.0
    %v1141 = vmax.f32 %v991, 0.0
    %v1142 = vmax.f32 %v996, 0.0
    %v1143 = vmax.f32 %v1001, 0.0
    %v1144 = vmax.f32 %v1006, 0.0
    %v1145 = vmax.f32 %v1011, 0.0
    %v1146 = vmax.f32 %v1016, 0.0
    %v1147 = vmax.f32 %v1021, 0.0
    %v1148 = vmax.f32 %v1026, 0.0
    %v1149 = vmax.f32 %v1031, 0.0
    %v1150 = vmax.f32 %v1036, 0.0
    %v1151 = vmax.f32 %v1041, 0.0
    %v1152 = vmax.f32 %v1046, 0.0
    %v1153 = vmax.f32 %v1051, 0.0
    %v1154 = vmax.f32 %v1056, 0.0
    %v1155 = vmax.f32 %v1061, 0.0
    %v1156 = vmax.f32 %v1066, 0.0
    %v1157 = vmax.f32 %v1071, 0.0
    %v1158 = vmax.f32 %v1076, 0.0
    %v1159 = vmax.f32 %v1081, 0.0
    %v1160 = vmax.f32 %v1086, 0.0
    %v1161 = vmax.f32 %v1091, 0.0
    %v1162 = vmax.f32 %v1096, 0.0
    %v1163 = vmax.f32 %v1101, 0.0
    %v1164 = vmax.f32 %v1106, 0.0
    %v1165 = vmax.f32 %v1111, 0.0
    %v1166 = vmax.f32 %v1116, 0.0
    %v1167 = vmax.f32 %v1121, 0.0
    %v1168 = vmax.f32 %v1126, 0.0
    %v1169 = vmax.f32 %v1131, 0.0
    %v1170 = vmax.f32 %v1136, 0.0
    %v1171 = vld [vmem:[%s7] sm:$0x1]
    %v1172 = vld [vmem:[#allocation2] sm:$0x1]
    %1174 = vset.pattern.permute.xlu0 0
    %1175 = vperm.xlu0 %1174, %v1172
    %v1176 = vpop.permute.xlu0 %1175
    %v1178 = vlaneseq
    %v1179 = vshrl.u32 %v1178, 7
    %v1180 = vsub.s32 0, %v1179
    %v1181 = vrot.slane %v1176, %v1180
    %vm1182 = vcmask 523264
    %v1184 = vsel %vm1182, %v1171, 0
    %v1187 = vsel %vm1182, %v1139, 0
    %v1190 = vsel %vm1182, %v1140, 0
    %v1193 = vsel %vm1182, %v1141, 0
    %v1196 = vsel %vm1182, %v1142, 0
    %v1199 = vsel %vm1182, %v1143, 0
    %v1202 = vsel %vm1182, %v1144, 0
    %v1205 = vsel %vm1182, %v1145, 0
    %v1208 = vsel %vm1182, %v1146, 0
    %v1211 = vsel %vm1182, %v1147, 0
    %v1214 = vsel %vm1182, %v1148, 0
    %v1217 = vsel %vm1182, %v1149, 0
    %v1220 = vsel %vm1182, %v1150, 0
    %v1223 = vsel %vm1182, %v1151, 0
    %v1226 = vsel %vm1182, %v1152, 0
    %v1229 = vsel %vm1182, %v1153, 0
    %v1232 = vsel %vm1182, %v1154, 0
    %1234 = vmatprep.subr.mxu0 0.0
    %1235 = vmatpush1.xpose.msra.mxu0 %v1187
    %1236 = vmatprep.subr.mxu0 0.0
    %1237 = vmatpush1.xpose.msra.mxu0 %v1190
    %1238 = vmatprep.subr.mxu0 0.0
    %1239 = vmatpush1.xpose.msra.mxu0 %v1193
    %1240 = vmatprep.subr.mxu0 0.0
    %1241 = vmatpush1.xpose.msra.mxu0 %v1196
    %1242 = vmatprep.subr.mxu0 0.0
    %1243 = vmatpush1.xpose.msra.mxu0 %v1199
    %1244 = vmatprep.subr.mxu0 0.0
    %1245 = vmatpush1.xpose.msra.mxu0 %v1202
    %1246 = vmatprep.subr.mxu0 0.0
    %1247 = vmatpush1.xpose.msra.mxu0 %v1205
    %1248 = vmatprep.subr.mxu0 0.0
    %1249 = vmatpush1.xpose.msra.mxu0 %v1208
    %1250 = vmatprep.subr.mxu0 0.0
    %1251 = vmatpush1.xpose.msra.mxu0 %v1211
    %1252 = vmatprep.subr.mxu0 0.0
    %1253 = vmatpush1.xpose.msra.mxu0 %v1214
    %1254 = vmatprep.subr.mxu0 0.0
    %1255 = vmatpush1.xpose.msra.mxu0 %v1217
    %1256 = vmatprep.subr.mxu0 0.0
    %1257 = vmatpush1.xpose.msra.mxu0 %v1220
    %1258 = vmatprep.subr.mxu0 0.0
    %1259 = vmatpush1.xpose.msra.mxu0 %v1223
    %1260 = vmatprep.subr.mxu0 0.0
    %1261 = vmatpush1.xpose.msra.mxu0 %v1226
    %1262 = vmatprep.subr.mxu0 0.0
    %1263 = vmatpush1.xpose.msra.mxu0 %v1229
    %1264 = vmatprep.subr.mxu0 0.0
    %1265 = vmatpush1.xpose.msra.mxu0 %v1232
    %1266 = vmatprep.subr.mxu0 0.0
    %1267 = vmatpush1.xpose.msra.mxu0 0.0
    %1268 = vmatprep.subr.mxu0 0.0
    %1269 = vmatpush1.xpose.msra.mxu0 0.0
    %1270 = vmatprep.subr.mxu0 0.0
    %1271 = vmatpush1.xpose.msra.mxu0 0.0
    %1272 = vmatprep.subr.mxu0 0.0
    %1273 = vmatpush1.xpose.msra.mxu0 0.0
    %1274 = vmatprep.subr.mxu0 0.0
    %1275 = vmatpush1.xpose.msra.mxu0 0.0
    %1276 = vmatprep.subr.mxu0 0.0
    %1277 = vmatpush1.xpose.msra.mxu0 0.0
    %1278 = vmatprep.subr.mxu0 0.0
    %1279 = vmatpush1.xpose.msra.mxu0 0.0
    %1280 = vmatprep.subr.mxu0 0.0
    %1281 = vmatpush1.xpose.msra.mxu0 0.0
    %1282 = vmatprep.subr.mxu0 0.0
    %1283 = vmatpush1.xpose.msra.mxu0 0.0
    %1284 = vmatprep.subr.mxu0 0.0
    %1285 = vmatpush1.xpose.msra.mxu0 0.0
    %1286 = vmatprep.subr.mxu0 0.0
    %1287 = vmatpush1.xpose.msra.mxu0 0.0
    %1288 = vmatprep.subr.mxu0 0.0
    %1289 = vmatpush1.xpose.msra.mxu0 0.0
    %1290 = vmatprep.subr.mxu0 0.0
    %1291 = vmatpush1.xpose.msra.mxu0 0.0
    %1292 = vmatprep.subr.mxu0 0.0
    %1293 = vmatpush1.xpose.msra.mxu0 0.0
    %1294 = vmatprep.subr.mxu0 0.0
    %1295 = vmatpush1.xpose.msra.mxu0 0.0
    %1296 = vmatprep.subr.mxu0 0.0
    %1297 = vmatpush1.xpose.msra.mxu0 0.0
    %1298 = vmatprep.mubr.f32.mxu0 0.0
    %1299 = vmatmul.mubr.f32.gmra.mrb[0].mxu0 %v1184
    %v1300 = vpop.f32.mrb[0].mxu0
    %v1301 = vadd.f32 %v1181, %v1300
    %v1302 = vpop.f32.mrb[0].mxu0
    %1303 = vdwg.mxu0
    %v1305 = vsel %vm1182, %v1155, 0
    %v1308 = vsel %vm1182, %v1156, 0
    %v1311 = vsel %vm1182, %v1157, 0
    %v1314 = vsel %vm1182, %v1158, 0
    %v1317 = vsel %vm1182, %v1159, 0
    %v1320 = vsel %vm1182, %v1160, 0
    %v1323 = vsel %vm1182, %v1161, 0
    %v1326 = vsel %vm1182, %v1162, 0
    %v1329 = vsel %vm1182, %v1163, 0
    %v1332 = vsel %vm1182, %v1164, 0
    %v1335 = vsel %vm1182, %v1165, 0
    %v1338 = vsel %vm1182, %v1166, 0
    %v1341 = vsel %vm1182, %v1167, 0
    %v1344 = vsel %vm1182, %v1168, 0
    %v1347 = vsel %vm1182, %v1169, 0
    %v1350 = vsel %vm1182, %v1170, 0
    %1352 = vmatprep.subr.mxu0 0.0
    %1353 = vmatpush1.xpose.msra.mxu0 %v1305
    %1354 = vmatprep.subr.mxu0 0.0
    %1355 = vmatpush1.xpose.msra.mxu0 %v1308
    %1356 = vmatprep.subr.mxu0 0.0
    %1357 = vmatpush1.xpose.msra.mxu0 %v1311
    %1358 = vmatprep.subr.mxu0 0.0
    %1359 = vmatpush1.xpose.msra.mxu0 %v1314
    %1360 = vmatprep.subr.mxu0 0.0
    %1361 = vmatpush1.xpose.msra.mxu0 %v1317
    %1362 = vmatprep.subr.mxu0 0.0
    %1363 = vmatpush1.xpose.msra.mxu0 %v1320
    %1364 = vmatprep.subr.mxu0 0.0
    %1365 = vmatpush1.xpose.msra.mxu0 %v1323
    %1366 = vmatprep.subr.mxu0 0.0
    %1367 = vmatpush1.xpose.msra.mxu0 %v1326
    %1368 = vmatprep.subr.mxu0 0.0
    %1369 = vmatpush1.xpose.msra.mxu0 %v1329
    %1370 = vmatprep.subr.mxu0 0.0
    %1371 = vmatpush1.xpose.msra.mxu0 %v1332
    %1372 = vmatprep.subr.mxu0 0.0
    %1373 = vmatpush1.xpose.msra.mxu0 %v1335
    %1374 = vmatprep.subr.mxu0 0.0
    %1375 = vmatpush1.xpose.msra.mxu0 %v1338
    %1376 = vmatprep.subr.mxu0 0.0
    %1377 = vmatpush1.xpose.msra.mxu0 %v1341
    %1378 = vmatprep.subr.mxu0 0.0
    %1379 = vmatpush1.xpose.msra.mxu0 %v1344
    %1380 = vmatprep.subr.mxu0 0.0
    %1381 = vmatpush1.xpose.msra.mxu0 %v1347
    %1382 = vmatprep.subr.mxu0 0.0
    %1383 = vmatpush1.xpose.msra.mxu0 %v1350
    %1384 = vmatprep.subr.mxu0 0.0
    %1385 = vmatpush1.xpose.msra.mxu0 0.0
    %1386 = vmatprep.subr.mxu0 0.0
    %1387 = vmatpush1.xpose.msra.mxu0 0.0
    %1388 = vmatprep.subr.mxu0 0.0
    %1389 = vmatpush1.xpose.msra.mxu0 0.0
    %1390 = vmatprep.subr.mxu0 0.0
    %1391 = vmatpush1.xpose.msra.mxu0 0.0
    %1392 = vmatprep.subr.mxu0 0.0
    %1393 = vmatpush1.xpose.msra.mxu0 0.0
    %1394 = vmatprep.subr.mxu0 0.0
    %1395 = vmatpush1.xpose.msra.mxu0 0.0
    %1396 = vmatprep.subr.mxu0 0.0
    %1397 = vmatpush1.xpose.msra.mxu0 0.0
    %1398 = vmatprep.subr.mxu0 0.0
    %1399 = vmatpush1.xpose.msra.mxu0 0.0
    %1400 = vmatprep.subr.mxu0 0.0
    %1401 = vmatpush1.xpose.msra.mxu0 0.0
    %1402 = vmatprep.subr.mxu0 0.0
    %1403 = vmatpush1.xpose.msra.mxu0 0.0
    %1404 = vmatprep.subr.mxu0 0.0
    %1405 = vmatpush1.xpose.msra.mxu0 0.0
    %1406 = vmatprep.subr.mxu0 0.0
    %1407 = vmatpush1.xpose.msra.mxu0 0.0
    %1408 = vmatprep.subr.mxu0 0.0
    %1409 = vmatpush1.xpose.msra.mxu0 0.0
    %1410 = vmatprep.subr.mxu0 0.0
    %1411 = vmatpush1.xpose.msra.mxu0 0.0
    %1412 = vmatprep.subr.mxu0 0.0
    %1413 = vmatpush1.xpose.msra.mxu0 0.0
    %1414 = vmatprep.subr.mxu0 0.0
    %1415 = vmatpush1.xpose.msra.mxu0 0.0
    %1416 = vmatprep.mubr.f32.mxu0 0.0
    %1417 = vmatmul.mubr.f32.gmra.mrb[0].mxu0 %v1184
    %v1418 = vpop.f32.mrb[0].mxu0
    %v1419 = vadd.f32 %v1181, %v1418
    %v1420 = vpop.f32.mrb[0].mxu0
    %1421 = vdwg.mxu0
    %vm1422 = vcmask 1040384
    %v1423 = vsel %vm1422, %v1301, -inf
    %1424 = vmax.xlane.f32.xlu0 %v1423
    %v1425 = vpop.xlane.xlu0 %1424
    %v1426 = vsel %vm1422, %v1419, -inf
    %1427 = vmax.xlane.f32.xlu0 %v1426
    %v1428 = vpop.xlane.xlu0 %1427
    %v1429 = vsub.f32 %v1301, %v1425
    %v1430 = vsub.f32 %v1419, %v1428
    %v1431 = vmul.f32 %v1429, 1.442695
    %v1432 = vpow.pop %v1431
    %v1433 = vmul.f32 %v1430, 1.442695
    %v1434 = vpow.pop %v1433
    %v1435 = vsel %vm1422, %v1432, 0.0
    %1436 = vadd.xlane.f32.xlu0 %v1435
    %v1437 = vpop.xlane.xlu0 %1436
    %v1438 = vsel %vm1422, %v1434, 0.0
    %1439 = vadd.xlane.f32.xlu0 %v1438
    %v1440 = vpop.xlane.xlu0 %1439
    %v1441 = vrcp.pop %v1437
    %v1442 = vrcp.pop %v1440
    %v1443 = vmul.f32 %v1432, %v1441
    %v1444 = vmul.f32 %v1434, %v1442
    %1445 = vmatprep.subr.mxu0 0.0
    %1446 = vmatpush1.msra.mxu0 %v1139
    %1447 = vmatprep.subr.mxu0 0.0
    %1448 = vmatpush1.msra.mxu0 %v1140
    %1449 = vmatprep.subr.mxu0 0.0
    %1450 = vmatpush1.msra.mxu0 %v1141
    %1451 = vmatprep.subr.mxu0 0.0
    %1452 = vmatpush1.msra.mxu0 %v1142
    %1453 = vmatprep.subr.mxu0 0.0
    %1454 = vmatpush1.msra.mxu0 %v1143
    %1455 = vmatprep.subr.mxu0 0.0
    %1456 = vmatpush1.msra.mxu0 %v1144
    %1457 = vmatprep.subr.mxu0 0.0
    %1458 = vmatpush1.msra.mxu0 %v1145
    %1459 = vmatprep.subr.mxu0 0.0
    %1460 = vmatpush1.msra.mxu0 %v1146
    %1461 = vmatprep.subr.mxu0 0.0
    %1462 = vmatpush1.msra.mxu0 %v1147
    %1463 = vmatprep.subr.mxu0 0.0
    %1464 = vmatpush1.msra.mxu0 %v1148
    %1465 = vmatprep.subr.mxu0 0.0
    %1466 = vmatpush1.msra.mxu0 %v1149
    %1467 = vmatprep.subr.mxu0 0.0
    %1468 = vmatpush1.msra.mxu0 %v1150
    %1469 = vmatprep.subr.mxu0 0.0
    %1470 = vmatpush1.msra.mxu0 %v1151
    %1471 = vmatprep.subr.mxu0 0.0
    %1472 = vmatpush1.msra.mxu0 %v1152
    %1473 = vmatprep.subr.mxu0 0.0
    %1474 = vmatpush1.msra.mxu0 %v1153
    %1475 = vmatprep.subr.mxu0 0.0
    %1476 = vmatpush1.msra.mxu0 %v1154
    %1477 = vmatprep.subr.mxu0 0.0
    %1478 = vmatpush1.msra.mxu0 0.0
    %1479 = vmatprep.subr.mxu0 0.0
    %1480 = vmatpush1.msra.mxu0 0.0
    %1481 = vmatprep.subr.mxu0 0.0
    %1482 = vmatpush1.msra.mxu0 0.0
    %1483 = vmatprep.subr.mxu0 0.0
    %1484 = vmatpush1.msra.mxu0 0.0
    %1485 = vmatprep.subr.mxu0 0.0
    %1486 = vmatpush1.msra.mxu0 0.0
    %1487 = vmatprep.subr.mxu0 0.0
    %1488 = vmatpush1.msra.mxu0 0.0
    %1489 = vmatprep.subr.mxu0 0.0
    %1490 = vmatpush1.msra.mxu0 0.0
    %1491 = vmatprep.subr.mxu0 0.0
    %1492 = vmatpush1.msra.mxu0 0.0
    %1493 = vmatprep.subr.mxu0 0.0
    %1494 = vmatpush1.msra.mxu0 0.0
    %1495 = vmatprep.subr.mxu0 0.0
    %1496 = vmatpush1.msra.mxu0 0.0
    %1497 = vmatprep.subr.mxu0 0.0
    %1498 = vmatpush1.msra.mxu0 0.0
    %1499 = vmatprep.subr.mxu0 0.0
    %1500 = vmatpush1.msra.mxu0 0.0
    %1501 = vmatprep.subr.mxu0 0.0
    %1502 = vmatpush1.msra.mxu0 0.0
    %1503 = vmatprep.subr.mxu0 0.0
    %1504 = vmatpush1.msra.mxu0 0.0
    %1505 = vmatprep.subr.mxu0 0.0
    %1506 = vmatpush1.msra.mxu0 0.0
    %1507 = vmatprep.subr.mxu0 0.0
    %1508 = vmatpush1.msra.mxu0 0.0
    %1509 = vmatprep.mubr.f32.mxu0 0.0
    %1510 = vmatmul.mubr.f32.gmra.mrb[0].mxu0 %v1443
    %v1511 = vpop.f32.mrb[0].mxu0
    %v1512 = vadd.f32 0.0, %v1511
    %v1513 = vpop.f32.mrb[0].mxu0
    %1514 = vdwg.mxu0
    %1515 = vmatprep.subr.mxu0 0.0
    %1516 = vmatpush1.msra.mxu0 %v1155
    %1517 = vmatprep.subr.mxu0 0.0
    %1518 = vmatpush1.msra.mxu0 %v1156
    %1519 = vmatprep.subr.mxu0 0.0
    %1520 = vmatpush1.msra.mxu0 %v1157
    %1521 = vmatprep.subr.mxu0 0.0
    %1522 = vmatpush1.msra.mxu0 %v1158
    %1523 = vmatprep.subr.mxu0 0.0
    %1524 = vmatpush1.msra.mxu0 %v1159
    %1525 = vmatprep.subr.mxu0 0.0
    %1526 = vmatpush1.msra.mxu0 %v1160
    %1527 = vmatprep.subr.mxu0 0.0
    %1528 = vmatpush1.msra.mxu0 %v1161
    %1529 = vmatprep.subr.mxu0 0.0
    %1530 = vmatpush1.msra.mxu0 %v1162
    %1531 = vmatprep.subr.mxu0 0.0
    %1532 = vmatpush1.msra.mxu0 %v1163
    %1533 = vmatprep.subr.mxu0 0.0
    %1534 = vmatpush1.msra.mxu0 %v1164
    %1535 = vmatprep.subr.mxu0 0.0
    %1536 = vmatpush1.msra.mxu0 %v1165
    %1537 = vmatprep.subr.mxu0 0.0
    %1538 = vmatpush1.msra.mxu0 %v1166
    %1539 = vmatprep.subr.mxu0 0.0
    %1540 = vmatpush1.msra.mxu0 %v1167
    %1541 = vmatprep.subr.mxu0 0.0
    %1542 = vmatpush1.msra.mxu0 %v1168
    %1543 = vmatprep.subr.mxu0 0.0
    %1544 = vmatpush1.msra.mxu0 %v1169
    %1545 = vmatprep.subr.mxu0 0.0
    %1546 = vmatpush1.msra.mxu0 %v1170
    %1547 = vmatprep.subr.mxu0 0.0
    %1548 = vmatpush1.msra.mxu0 0.0
    %1549 = vmatprep.subr.mxu0 0.0
    %1550 = vmatpush1.msra.mxu0 0.0
    %1551 = vmatprep.subr.mxu0 0.0
    %1552 = vmatpush1.msra.mxu0 0.0
    %1553 = vmatprep.subr.mxu0 0.0
    %1554 = vmatpush1.msra.mxu0 0.0
    %1555 = vmatprep.subr.mxu0 0.0
    %1556 = vmatpush1.msra.mxu0 0.0
    %1557 = vmatprep.subr.mxu0 0.0
    %1558 = vmatpush1.msra.mxu0 0.0
    %1559 = vmatprep.subr.mxu0 0.0
    %1560 = vmatpush1.msra.mxu0 0.0
    %1561 = vmatprep.subr.mxu0 0.0
    %1562 = vmatpush1.msra.mxu0 0.0
    %1563 = vmatprep.subr.mxu0 0.0
    %1564 = vmatpush1.msra.mxu0 0.0
    %1565 = vmatprep.subr.mxu0 0.0
    %1566 = vmatpush1.msra.mxu0 0.0
    %1567 = vmatprep.subr.mxu0 0.0
    %1568 = vmatpush1.msra.mxu0 0.0
    %1569 = vmatprep.subr.mxu0 0.0
    %1570 = vmatpush1.msra.mxu0 0.0
    %1571 = vmatprep.subr.mxu0 0.0
    %1572 = vmatpush1.msra.mxu0 0.0
    %1573 = vmatprep.subr.mxu0 0.0
    %1574 = vmatpush1.msra.mxu0 0.0
    %1575 = vmatprep.subr.mxu0 0.0
    %1576 = vmatpush1.msra.mxu0 0.0
    %1577 = vmatprep.subr.mxu0 0.0
    %1578 = vmatpush1.msra.mxu0 0.0
    %1579 = vmatprep.mubr.f32.mxu0 0.0
    %1580 = vmatmul.mubr.f32.gmra.mrb[0].mxu0 %v1444
    %v1581 = vpop.f32.mrb[0].mxu0
    %v1582 = vadd.f32 0.0, %v1581
    %v1583 = vpop.f32.mrb[0].mxu0
    %1584 = vdwg.mxu0
    %v1587 = vrot.slane %v1582, 7
    %vm1588 = vcmask 1041409
    %v1589 = vsel %vm1588, %v1587, %v1512
    %vm1591 = vcmask 517120
    %1592 = vst.msk [vmem:[#allocation3] sm:$0x3] %vm1591, %v1589
    %v1595 = vrot.slane %v1444, 7
    %v1596 = vsel %vm1588, %v1595, %v1443
    %1598 = vst [vmem:[#allocation5] sm:$0x3] %v1596
    // Predicated region
    $region38: #{tpu_custom_call.1} parent=1 // pred_check
      _
    $region39: #{tpu_custom_call.1} parent=1 // pred_check_branch
      %1600 = sbr.rel (0) target = $region41
    $region40: #{tpu_custom_call.1} parent=1 // pred_region
      %s1602 = ssub.s32 32, 32
      %1603 = vsyncadd [#allocation4], %s1602
      %s1605 = sshll.u32 [#allocation3], 4
      %s1606 = int_to_ptr.vmem [resolvable:$true] %s1605
      %1608 = dma.vmem_to_hbm [thread:$0]  %s1606, 32, %s9, [#allocation4]
    $region41: #{tpu_custom_call.1} parent=1 // pred_fallthru
      _
    // Predicated region
    $region42: #{tpu_custom_call.1} parent=1 // pred_check
      _
    $region43: #{tpu_custom_call.1} parent=1 // pred_check_branch
      %1610 = sbr.rel (0) target = $region45
    $region44: #{tpu_custom_call.1} parent=1 // pred_region
      %s1612 = ssub.s32 32, 32
      %1613 = vsyncadd [#allocation6], %s1612
      %s1615 = sshll.u32 [#allocation5], 4
      %s1616 = int_to_ptr.vmem [resolvable:$true] %s1615
      %1618 = dma.vmem_to_hbm [thread:$0]  %s1616, 32, %s10, [#allocation6]
    $region45: #{tpu_custom_call.1} parent=1 // pred_fallthru
      _
    // Predicated region
    $region46: #{tpu_custom_call.1} parent=1 // pred_check
      _
    $region47: #{tpu_custom_call.1} parent=1 // pred_check_branch
      %1620 = sbr.rel (0) target = $region49
    $region48: #{tpu_custom_call.1} parent=1 // pred_region
      %1621 = dma.done [#allocation4], 32
    $region49: #{tpu_custom_call.1} parent=1 // pred_fallthru
      _
    // Predicated region
    $region50: #{tpu_custom_call.1} parent=1 // pred_check
      _
    $region51: #{tpu_custom_call.1} parent=1 // pred_check_branch
      %1623 = sbr.rel (0) target = $region53
    $region52: #{tpu_custom_call.1} parent=1 // pred_region
      %1624 = dma.done [#allocation6], 32
    $region53: #{tpu_custom_call.1} parent=1 // pred_fallthru
      _
    %1625 = vsyncpa [#allocation4], 1
    %1626 = vsyncpa [#allocation6], 1

</llo_original>
